<compile_context>
chip_gen: v6e
topology: v6e:2x2x1
jax: 0.10.0
libtpu: 0.0.40
codegen_flags: <defaults>
</compile_context>

<pallas_src>
import functools

import jax
import jax.numpy as jnp
from jax import lax
from jax.experimental import pallas as pl
from jax.experimental.pallas import tpu as pltpu


# ------------------------------- Pallas kernel -------------------------------

def _gcn_tcn_kernel(x_ref, slab_ref, o_ref, g_sc, *, offs, N, T, ks, C0):
    """Full GCN_TCN forward for one batch element.

    x_ref:    (1, N, T)        node signal (in_channels == 1)
    slab_ref: (SLAB_R, SLAB_W) packed weights/biases (theta folded into the
                               graph operator, BN folded into the convs)
    o_ref:    (1, 1, R)        end_1 output, columns r = n*T + t (t = T-1 is
                               invalid and sliced off by the wrapper)
    g_sc:     (C0, R)          VMEM scratch used for the GCN relayout
    """
    f32 = jnp.float32
    R = N * T

    def W(name):
        r0, nr, nc = offs[name]
        return slab_ref[r0:r0 + nr, 0:nc]

    # ---- GCN: graph operator with theta pre-folded -------------------------
    # y[n*C0 + c, t] = sum_m Gop[n*C0 + c, m] * x[m, t]
    y = jnp.dot(W("gop"), x_ref[0], preferred_element_type=f32)      # (N*C0, T)
    # relayout to lane-dense (C0, N*T): g[c, n*T + t] = y[n*C0 + c, t]
    for n in range(N):
        g_sc[:, n * T:(n + 1) * T] = y[n * C0:(n + 1) * C0, :]
    g = g_sc[...]                                                    # (C0, R)

    # per-lane time index t = r % T (precomputed once; T is a power of 2 here)
    rid = lax.broadcasted_iota(jnp.int32, (1, R), 1)
    tpos = (rid & (T - 1)) if (T & (T - 1)) == 0 else rid % T

    def shift_back(h, s):
        # causal shift: out[c, n*T + t] = h[c, n*T + t - s] if t >= s else 0
        if s == 0:
            return h
        return jnp.where(tpos >= s, pltpu.roll(h, s, axis=1), 0.0)

    def causal_conv(h, wname, bname, dilation):
        # all ks taps collapsed into one matmul over the (ks * Cin) axis
        hcat = jnp.concatenate(
            [shift_back(h, (ks - 1 - j) * dilation) for j in range(ks)], axis=0)
        return jnp.dot(W(wname), hcat, preferred_element_type=f32) + W(bname)

    relu = lambda v: jnp.maximum(v, 0.0)

    # ---- TCN block 0 (dilation 1), identity residual, final ReLU -----------
    h = relu(causal_conv(g, "w01", "b01", 1))
    h = relu(causal_conv(h, "w02", "b02", 1))
    out0 = relu(h + g)                                               # (C0, R)

    # ---- TCN block 1 (dilation 2), 1x1-conv residual, no final ReLU --------
    h = relu(causal_conv(out0, "w11", "b11", 2))
    h = relu(causal_conv(h, "w12", "b12", 2))
    out1 = h + jnp.dot(W("wd"), out0, preferred_element_type=f32) + W("bd")

    # ---- end: 1x1 conv + ReLU ----------------------------------------------
    e = relu(jnp.dot(W("we"), out1, preferred_element_type=f32) + W("be"))

    # ---- end_1: (1, 2) conv over time (taps t and t+1) ----------------------
    e_next = jnp.where(tpos <= T - 2, pltpu.roll(e, R - 1, axis=1), 0.0)
    ecat = jnp.concatenate([e, e_next], axis=0)
    z = jnp.dot(W("we1"), ecat, preferred_element_type=f32) + W("be1")
    o_ref[0] = z                                                     # (1, R)


# ------------------------------ kernel wrapper --------------------------------

def gcn_tcn_forward(batch_x, slab, *, offs, N, T, ks, C0, pred_len):
    # batch_x: (B, input_len=T, num_node=N)
    B = batch_x.shape[0]
    R = N * T
    assert pred_len <= T - 1
    x3 = jnp.transpose(batch_x, (0, 2, 1))               # (B, N, T); C_in == 1

    out = pl.pallas_call(
        functools.partial(_gcn_tcn_kernel, offs=offs, N=N, T=T, ks=ks, C0=C0),
        out_shape=jax.ShapeDtypeStruct((B, 1, R), jnp.float32),
        grid=(B,),
        in_specs=[
            pl.BlockSpec((1, N, T), lambda b: (b, 0, 0)),
            pl.BlockSpec(slab.shape, lambda b: (0, 0)),
        ],
        out_specs=pl.BlockSpec((1, 1, R), lambda b: (b, 0, 0)),
        scratch_shapes=[pltpu.VMEM((C0, R), jnp.float32)],
        compiler_params=pltpu.CompilerParams(
            dimension_semantics=("parallel",)),
    )(x3, slab)

    out = out.reshape(B, N, T).transpose(0, 2, 1)         # (B, T, N)
    # end_1 is valid for t in [0, T-2]; take the last pred_len of those.
    return out[:, T - 1 - pred_len:T - 1, :]              # (B, pred_len, N)


# ------------------- one-time host-side parameter preparation ----------------

def pack_params(params, *, N, K, C0, eps=1e-5):
    """Adjacency + Chebyshev + theta fold + BN fold + slab packing (runs once)."""
    f32 = jnp.float32

    # adaptive adjacency (add_apt=True): A = (1 - I) * (E1 @ E2)
    A = (1.0 - jnp.eye(N, dtype=f32)) * (params["E1"] @ params["E2"])
    # normalized Laplacian  L = D^{-1/2} A^T D^{-1/2}
    d = A.sum(axis=1)
    dis = jnp.where(d > 0, 1.0 / jnp.sqrt(d), 0.0)
    L = (A * dis[None, :]).T * dis[None, :]
    polys = [jnp.eye(N, dtype=f32), L]
    for _ in range(2, K):
        polys.append(2.0 * (L @ polys[-1]) - polys[-2])
    Tk = jnp.stack(polys[:K], axis=0)                       # (K, N, N), Tk[k,m,n]

    # fold theta into the graph operator: Gop[n*C0 + c, m] = sum_k th[k,c] Tk[k,m,n]
    gop = jnp.einsum("kc,kmn->ncm", params["theta"], Tk).reshape(N * C0, N)

    def fold(w, b, bn):
        scale = bn["gamma"] / jnp.sqrt(bn["var"] + eps)     # per-Cout
        return w * scale, (b - bn["mean"]) * scale + bn["beta"]

    def cat_taps(wf):
        # (ks, Cin, Cout) -> (Cout, ks*Cin); rows j*Cin+ci contract with the
        # shifted copies stacked inside the kernel in the same order.
        ksz, cin, cout = wf.shape
        return jnp.transpose(wf, (2, 0, 1)).reshape(cout, ksz * cin)

    w01, b01 = fold(params["w01"], params["b01"], params["bn01"])
    w02, b02 = fold(params["w02"], params["b02"], params["bn02"])
    w11, b11 = fold(params["w11"], params["b11"], params["bn11"])
    w12, b12 = fold(params["w12"], params["b12"], params["bn12"])

    mats = [
        ("gop", gop),
        ("w01", cat_taps(w01)), ("w02", cat_taps(w02)),
        ("w11", cat_taps(w11)), ("w12", cat_taps(w12)),
        ("wd", params["wd"].T), ("we", params["we"].T),
        ("we1", params["we1"].T.reshape(1, -1)),
        ("b01", b01.reshape(-1, 1)), ("b02", b02.reshape(-1, 1)),
        ("b11", b11.reshape(-1, 1)), ("b12", b12.reshape(-1, 1)),
        ("bd", params["bd"].reshape(-1, 1)),
        ("be", params["be"].reshape(-1, 1)),
        ("be1", params["be1"].reshape(1, 1)),
    ]

    width = max(int(m.shape[1]) for _, m in mats)           # 48
    offs, blocks, r = {}, [], 0
    for name, m in mats:
        m = jnp.asarray(m, f32)
        nr, nc = int(m.shape[0]), int(m.shape[1])
        nr_pad = -(-nr // 8) * 8                            # 8-row aligned blocks
        blocks.append(jnp.zeros((nr_pad, width), f32).at[:nr, :nc].set(m))
        offs[name] = (r, nr, nc)
        r += nr_pad
    slab = jnp.concatenate(blocks, axis=0)                  # (352, 48)
    return slab, offs


# ----------------------------- parameter creation -----------------------------

def init_params(key, *, N, K, C0, C1, ks):
    keys = iter(jax.random.split(key, 40))

    def nrm(shape, scale=0.2):
        return scale * jax.random.normal(next(keys), shape, jnp.float32)

    def bn(c):
        gamma = 1.0 + 0.1 * jax.random.normal(next(keys), (c,), jnp.float32)
        beta = 0.1 * jax.random.normal(next(keys), (c,), jnp.float32)
        # inference-mode BN with fresh running stats (mean=0, var=1)
        return dict(gamma=gamma, beta=beta,
                    mean=jnp.zeros((c,), jnp.float32),
                    var=jnp.ones((c,), jnp.float32))

    return {
        # positive node embeddings so degree normalization stays finite
        "E1": jax.random.uniform(next(keys), (N, 2), jnp.float32, 0.05, 0.5),
        "E2": jax.random.uniform(next(keys), (2, N), jnp.float32, 0.05, 0.5),
        # Cheb_conv Theta_k: (in_channels=1, out=C0) stacked over K
        "theta": nrm((K, C0), 1.0),
        # TCN block 0: C0 -> C0 (dilation 1), identity residual
        "w01": nrm((ks, C0, C0)), "b01": nrm((C0,)), "bn01": bn(C0),
        "w02": nrm((ks, C0, C0)), "b02": nrm((C0,)), "bn02": bn(C0),
        # TCN block 1: C0 -> C1 (dilation 2), 1x1-conv residual
        "w11": nrm((ks, C0, C1)), "b11": nrm((C1,)), "bn11": bn(C1),
        "w12": nrm((ks, C1, C1)), "b12": nrm((C1,)), "bn12": bn(C1),
        "wd": nrm((C0, C1)), "bd": nrm((C1,)),
        # end: 1x1 conv C1 -> C1//2 ; end_1: (1,2) conv C1//2 -> 1 (2 taps)
        "we": nrm((C1, C1 // 2)), "be": nrm((C1 // 2,)),
        "we1": nrm((C1 // 2, 2)), "be1": nrm((1, 1)),
    }


# ------------------------------------ main ------------------------------------

if __name__ == "__main__":
    B, N, T = 2, 24, 16        # N fixed at 24 by Cheb_conv's torch.eye(24)
    pred_len, K, ks = 4, 3, 3  # output_len, gcn_k, kernel size
    C0, C1 = 8, 16             # config.channels_list

    key = jax.random.PRNGKey(0)
    kx, kp = jax.random.split(key)
    batch_x = jax.random.normal(kx, (B, T, N), jnp.float32)
    params = init_params(kp, N=N, K=K, C0=C0, C1=C1, ks=ks)

    # hoisted out of the per-call jit: adjacency, Chebyshev, theta/BN folding,
    # and packing everything into one weight slab.
    slab, offs = pack_params(params, N=N, K=K, C0=C0)

    fwd = jax.jit(functools.partial(gcn_tcn_forward, offs=offs, N=N, T=T,
                                    ks=ks, C0=C0, pred_len=pred_len))
    out = jax.block_until_ready(fwd(batch_x, slab))

    assert out.shape == (B, pred_len, N), out.shape
    assert bool(jnp.all(jnp.isfinite(out)))
    print("KERNEL_OK")
</pallas_src>

<mosaic_0001>
module attributes {stable_mosaic.version = 11 : i64} {
  func.func @_gcn_tcn_kernel(%arg0: i32, %arg1: memref<1x24x16xf32, #tpu.memory_space<vmem>>, %arg2: memref<352x48xf32, #tpu.memory_space<vmem>>, %arg3: memref<1x1x384xf32, #tpu.memory_space<vmem>>, %arg4: memref<8x384xf32, #tpu.memory_space<vmem>>) attributes {dimension_semantics = [#tpu.dimension_semantics<parallel>], iteration_bounds = array<i64: 2>, scalar_prefetch = 0 : i64, scratch_operands = 1 : i64, tpu.core_type = #tpu.core_type<tc>, window_params = [{transform_indices = @transform_0, window_bounds = array<i64: 1, 24, 16>}, {pipeline_mode = #tpu.pipeline_mode<synchronous>, transform_indices = @transform_1, window_bounds = array<i64: 352, 48>}, {transform_indices = @transform_2, window_bounds = array<i64: 1, 1, 384>}]} {
    %c0 = arith.constant 0 : index
    %c0_0 = arith.constant 0 : index
    %0 = vector.load %arg2[%c0, %c0_0] : memref<352x48xf32, #tpu.memory_space<vmem>>, vector<192x24xf32>
    %c0_1 = arith.constant 0 : index
    %c0_2 = arith.constant 0 : index
    %c0_3 = arith.constant 0 : index
    %1 = vector.load %arg1[%c0_1, %c0_2, %c0_3] : memref<1x24x16xf32, #tpu.memory_space<vmem>>, vector<1x24x16xf32>
    %2 = vector.shape_cast %1 : vector<1x24x16xf32> to vector<24x16xf32>
    %cst = arith.constant dense<0.000000e+00> : vector<192x16xf32>
    %3 = tpu.matmul %0, %2, %cst {dimension_numbers = #tpu.dot_dimension_numbers<[1], [0], [0], [1], [0, 0, 1, 1], [], []>} : vector<192x24xf32>, vector<24x16xf32>, vector<192x16xf32> -> vector<192x16xf32>
    %4 = vector.extract_strided_slice %3 {offsets = [0, 0], sizes = [8, 16], strides = [1, 1]} : vector<192x16xf32> to vector<8x16xf32>
    %c0_4 = arith.constant 0 : index
    %c0_5 = arith.constant 0 : index
    %5 = vector.load %arg4[%c0_4, %c0_5] : memref<8x384xf32, #tpu.memory_space<vmem>>, vector<8x16xf32>
    tpu.vector_store %arg4[%c0_4, %c0_5], %4 {strides = array<i32>} : memref<8x384xf32, #tpu.memory_space<vmem>>, vector<8x16xf32>,
    %6 = vector.extract_strided_slice %3 {offsets = [8, 0], sizes = [8, 16], strides = [1, 1]} : vector<192x16xf32> to vector<8x16xf32>
    %c0_6 = arith.constant 0 : index
    %c16 = arith.constant 16 : index
    %7 = vector.load %arg4[%c0_6, %c16] : memref<8x384xf32, #tpu.memory_space<vmem>>, vector<8x16xf32>
    tpu.vector_store %arg4[%c0_6, %c16], %6 {strides = array<i32>} : memref<8x384xf32, #tpu.memory_space<vmem>>, vector<8x16xf32>,
    %8 = vector.extract_strided_slice %3 {offsets = [16, 0], sizes = [8, 16], strides = [1, 1]} : vector<192x16xf32> to vector<8x16xf32>
    %c0_7 = arith.constant 0 : index
    %c32 = arith.constant 32 : index
    %9 = vector.load %arg4[%c0_7, %c32] : memref<8x384xf32, #tpu.memory_space<vmem>>, vector<8x16xf32>
    tpu.vector_store %arg4[%c0_7, %c32], %8 {strides = array<i32>} : memref<8x384xf32, #tpu.memory_space<vmem>>, vector<8x16xf32>,
    %10 = vector.extract_strided_slice %3 {offsets = [24, 0], sizes = [8, 16], strides = [1, 1]} : vector<192x16xf32> to vector<8x16xf32>
    %c0_8 = arith.constant 0 : index
    %c48 = arith.constant 48 : index
    %11 = vector.load %arg4[%c0_8, %c48] : memref<8x384xf32, #tpu.memory_space<vmem>>, vector<8x16xf32>
    tpu.vector_store %arg4[%c0_8, %c48], %10 {strides = array<i32>} : memref<8x384xf32, #tpu.memory_space<vmem>>, vector<8x16xf32>,
    %12 = vector.extract_strided_slice %3 {offsets = [32, 0], sizes = [8, 16], strides = [1, 1]} : vector<192x16xf32> to vector<8x16xf32>
    %c0_9 = arith.constant 0 : index
    %c64 = arith.constant 64 : index
    %13 = vector.load %arg4[%c0_9, %c64] : memref<8x384xf32, #tpu.memory_space<vmem>>, vector<8x16xf32>
    tpu.vector_store %arg4[%c0_9, %c64], %12 {strides = array<i32>} : memref<8x384xf32, #tpu.memory_space<vmem>>, vector<8x16xf32>,
    %14 = vector.extract_strided_slice %3 {offsets = [40, 0], sizes = [8, 16], strides = [1, 1]} : vector<192x16xf32> to vector<8x16xf32>
    %c0_10 = arith.constant 0 : index
    %c80 = arith.constant 80 : index
    %15 = vector.load %arg4[%c0_10, %c80] : memref<8x384xf32, #tpu.memory_space<vmem>>, vector<8x16xf32>
    tpu.vector_store %arg4[%c0_10, %c80], %14 {strides = array<i32>} : memref<8x384xf32, #tpu.memory_space<vmem>>, vector<8x16xf32>,
    %16 = vector.extract_strided_slice %3 {offsets = [48, 0], sizes = [8, 16], strides = [1, 1]} : vector<192x16xf32> to vector<8x16xf32>
    %c0_11 = arith.constant 0 : index
    %c96 = arith.constant 96 : index
    %17 = vector.load %arg4[%c0_11, %c96] : memref<8x384xf32, #tpu.memory_space<vmem>>, vector<8x16xf32>
    tpu.vector_store %arg4[%c0_11, %c96], %16 {strides = array<i32>} : memref<8x384xf32, #tpu.memory_space<vmem>>, vector<8x16xf32>,
    %18 = vector.extract_strided_slice %3 {offsets = [56, 0], sizes = [8, 16], strides = [1, 1]} : vector<192x16xf32> to vector<8x16xf32>
    %c0_12 = arith.constant 0 : index
    %c112 = arith.constant 112 : index
    %19 = vector.load %arg4[%c0_12, %c112] : memref<8x384xf32, #tpu.memory_space<vmem>>, vector<8x16xf32>
    tpu.vector_store %arg4[%c0_12, %c112], %18 {strides = array<i32>} : memref<8x384xf32, #tpu.memory_space<vmem>>, vector<8x16xf32>,
    %20 = vector.extract_strided_slice %3 {offsets = [64, 0], sizes = [8, 16], strides = [1, 1]} : vector<192x16xf32> to vector<8x16xf32>
    %c0_13 = arith.constant 0 : index
    %c128 = arith.constant 128 : index
    %21 = vector.load %arg4[%c0_13, %c128] : memref<8x384xf32, #tpu.memory_space<vmem>>, vector<8x16xf32>
    tpu.vector_store %arg4[%c0_13, %c128], %20 {strides = array<i32>} : memref<8x384xf32, #tpu.memory_space<vmem>>, vector<8x16xf32>,
    %22 = vector.extract_strided_slice %3 {offsets = [72, 0], sizes = [8, 16], strides = [1, 1]} : vector<192x16xf32> to vector<8x16xf32>
    %c0_14 = arith.constant 0 : index
    %c144 = arith.constant 144 : index
    %23 = vector.load %arg4[%c0_14, %c144] : memref<8x384xf32, #tpu.memory_space<vmem>>, vector<8x16xf32>
    tpu.vector_store %arg4[%c0_14, %c144], %22 {strides = array<i32>} : memref<8x384xf32, #tpu.memory_space<vmem>>, vector<8x16xf32>,
    %24 = vector.extract_strided_slice %3 {offsets = [80, 0], sizes = [8, 16], strides = [1, 1]} : vector<192x16xf32> to vector<8x16xf32>
    %c0_15 = arith.constant 0 : index
    %c160 = arith.constant 160 : index
    %25 = vector.load %arg4[%c0_15, %c160] : memref<8x384xf32, #tpu.memory_space<vmem>>, vector<8x16xf32>
    tpu.vector_store %arg4[%c0_15, %c160], %24 {strides = array<i32>} : memref<8x384xf32, #tpu.memory_space<vmem>>, vector<8x16xf32>,
    %26 = vector.extract_strided_slice %3 {offsets = [88, 0], sizes = [8, 16], strides = [1, 1]} : vector<192x16xf32> to vector<8x16xf32>
    %c0_16 = arith.constant 0 : index
    %c176 = arith.constant 176 : index
    %27 = vector.load %arg4[%c0_16, %c176] : memref<8x384xf32, #tpu.memory_space<vmem>>, vector<8x16xf32>
    tpu.vector_store %arg4[%c0_16, %c176], %26 {strides = array<i32>} : memref<8x384xf32, #tpu.memory_space<vmem>>, vector<8x16xf32>,
    %28 = vector.extract_strided_slice %3 {offsets = [96, 0], sizes = [8, 16], strides = [1, 1]} : vector<192x16xf32> to vector<8x16xf32>
    %c0_17 = arith.constant 0 : index
    %c192 = arith.constant 192 : index
    %29 = vector.load %arg4[%c0_17, %c192] : memref<8x384xf32, #tpu.memory_space<vmem>>, vector<8x16xf32>
    tpu.vector_store %arg4[%c0_17, %c192], %28 {strides = array<i32>} : memref<8x384xf32, #tpu.memory_space<vmem>>, vector<8x16xf32>,
    %30 = vector.extract_strided_slice %3 {offsets = [104, 0], sizes = [8, 16], strides = [1, 1]} : vector<192x16xf32> to vector<8x16xf32>
    %c0_18 = arith.constant 0 : index
    %c208 = arith.constant 208 : index
    %31 = vector.load %arg4[%c0_18, %c208] : memref<8x384xf32, #tpu.memory_space<vmem>>, vector<8x16xf32>
    tpu.vector_store %arg4[%c0_18, %c208], %30 {strides = array<i32>} : memref<8x384xf32, #tpu.memory_space<vmem>>, vector<8x16xf32>,
    %32 = vector.extract_strided_slice %3 {offsets = [112, 0], sizes = [8, 16], strides = [1, 1]} : vector<192x16xf32> to vector<8x16xf32>
    %c0_19 = arith.constant 0 : index
    %c224 = arith.constant 224 : index
    %33 = vector.load %arg4[%c0_19, %c224] : memref<8x384xf32, #tpu.memory_space<vmem>>, vector<8x16xf32>
    tpu.vector_store %arg4[%c0_19, %c224], %32 {strides = array<i32>} : memref<8x384xf32, #tpu.memory_space<vmem>>, vector<8x16xf32>,
    %34 = vector.extract_strided_slice %3 {offsets = [120, 0], sizes = [8, 16], strides = [1, 1]} : vector<192x16xf32> to vector<8x16xf32>
    %c0_20 = arith.constant 0 : index
    %c240 = arith.constant 240 : index
    %35 = vector.load %arg4[%c0_20, %c240] : memref<8x384xf32, #tpu.memory_space<vmem>>, vector<8x16xf32>
    tpu.vector_store %arg4[%c0_20, %c240], %34 {strides = array<i32>} : memref<8x384xf32, #tpu.memory_space<vmem>>, vector<8x16xf32>,
    %36 = vector.extract_strided_slice %3 {offsets = [128, 0], sizes = [8, 16], strides = [1, 1]} : vector<192x16xf32> to vector<8x16xf32>
    %c0_21 = arith.constant 0 : index
    %c256 = arith.constant 256 : index
    %37 = vector.load %arg4[%c0_21, %c256] : memref<8x384xf32, #tpu.memory_space<vmem>>, vector<8x16xf32>
    tpu.vector_store %arg4[%c0_21, %c256], %36 {strides = array<i32>} : memref<8x384xf32, #tpu.memory_space<vmem>>, vector<8x16xf32>,
    %38 = vector.extract_strided_slice %3 {offsets = [136, 0], sizes = [8, 16], strides = [1, 1]} : vector<192x16xf32> to vector<8x16xf32>
    %c0_22 = arith.constant 0 : index
    %c272 = arith.constant 272 : index
    %39 = vector.load %arg4[%c0_22, %c272] : memref<8x384xf32, #tpu.memory_space<vmem>>, vector<8x16xf32>
    tpu.vector_store %arg4[%c0_22, %c272], %38 {strides = array<i32>} : memref<8x384xf32, #tpu.memory_space<vmem>>, vector<8x16xf32>,
    %40 = vector.extract_strided_slice %3 {offsets = [144, 0], sizes = [8, 16], strides = [1, 1]} : vector<192x16xf32> to vector<8x16xf32>
    %c0_23 = arith.constant 0 : index
    %c288 = arith.constant 288 : index
    %41 = vector.load %arg4[%c0_23, %c288] : memref<8x384xf32, #tpu.memory_space<vmem>>, vector<8x16xf32>
    tpu.vector_store %arg4[%c0_23, %c288], %40 {strides = array<i32>} : memref<8x384xf32, #tpu.memory_space<vmem>>, vector<8x16xf32>,
    %42 = vector.extract_strided_slice %3 {offsets = [152, 0], sizes = [8, 16], strides = [1, 1]} : vector<192x16xf32> to vector<8x16xf32>
    %c0_24 = arith.constant 0 : index
    %c304 = arith.constant 304 : index
    %43 = vector.load %arg4[%c0_24, %c304] : memref<8x384xf32, #tpu.memory_space<vmem>>, vector<8x16xf32>
    tpu.vector_store %arg4[%c0_24, %c304], %42 {strides = array<i32>} : memref<8x384xf32, #tpu.memory_space<vmem>>, vector<8x16xf32>,
    %44 = vector.extract_strided_slice %3 {offsets = [160, 0], sizes = [8, 16], strides = [1, 1]} : vector<192x16xf32> to vector<8x16xf32>
    %c0_25 = arith.constant 0 : index
    %c320 = arith.constant 320 : index
    %45 = vector.load %arg4[%c0_25, %c320] : memref<8x384xf32, #tpu.memory_space<vmem>>, vector<8x16xf32>
    tpu.vector_store %arg4[%c0_25, %c320], %44 {strides = array<i32>} : memref<8x384xf32, #tpu.memory_space<vmem>>, vector<8x16xf32>,
    %46 = vector.extract_strided_slice %3 {offsets = [168, 0], sizes = [8, 16], strides = [1, 1]} : vector<192x16xf32> to vector<8x16xf32>
    %c0_26 = arith.constant 0 : index
    %c336 = arith.constant 336 : index
    %47 = vector.load %arg4[%c0_26, %c336] : memref<8x384xf32, #tpu.memory_space<vmem>>, vector<8x16xf32>
    tpu.vector_store %arg4[%c0_26, %c336], %46 {strides = array<i32>} : memref<8x384xf32, #tpu.memory_space<vmem>>, vector<8x16xf32>,
    %48 = vector.extract_strided_slice %3 {offsets = [176, 0], sizes = [8, 16], strides = [1, 1]} : vector<192x16xf32> to vector<8x16xf32>
    %c0_27 = arith.constant 0 : index
    %c352 = arith.constant 352 : index
    %49 = vector.load %arg4[%c0_27, %c352] : memref<8x384xf32, #tpu.memory_space<vmem>>, vector<8x16xf32>
    tpu.vector_store %arg4[%c0_27, %c352], %48 {strides = array<i32>} : memref<8x384xf32, #tpu.memory_space<vmem>>, vector<8x16xf32>,
    %50 = vector.extract_strided_slice %3 {offsets = [184, 0], sizes = [8, 16], strides = [1, 1]} : vector<192x16xf32> to vector<8x16xf32>
    %c0_28 = arith.constant 0 : index
    %c368 = arith.constant 368 : index
    %51 = vector.load %arg4[%c0_28, %c368] : memref<8x384xf32, #tpu.memory_space<vmem>>, vector<8x16xf32>
    tpu.vector_store %arg4[%c0_28, %c368], %50 {strides = array<i32>} : memref<8x384xf32, #tpu.memory_space<vmem>>, vector<8x16xf32>,
    %c0_29 = arith.constant 0 : index
    %c0_30 = arith.constant 0 : index
    %52 = vector.load %arg4[%c0_29, %c0_30] : memref<8x384xf32, #tpu.memory_space<vmem>>, vector<8x384xf32>
    %53 = tpu.iota {dimensions = array<i32: 1>} : vector<1x384xi32>
    %c15_i32 = arith.constant 15 : i32
    %54 = vector.broadcast %c15_i32 : i32 to vector<1x384xi32>
    %55 = arith.andi %53, %54 : vector<1x384xi32>
    %c2_i32 = arith.constant 2 : i32
    %56 = vector.broadcast %c2_i32 : i32 to vector<1x384xi32>
    %57 = arith.cmpi sge, %55, %56 : vector<1x384xi32>
    %c2_i32_31 = arith.constant 2 : i32
    %58 = tpu.dynamic_rotate %52 by %c2_i32_31 dim 1 : vector<8x384xf32>, i32 -> vector<8x384xf32>
    %cst_32 = arith.constant 0.000000e+00 : f32
    %59 = vector.shape_cast %57 : vector<1x384xi1> to vector<1x384xi1>
    %60 = vector.broadcast %59 : vector<1x384xi1> to vector<8x384xi1>
    %61 = vector.broadcast %cst_32 : f32 to vector<8x384xf32>
    %62 = arith.select %60, %58, %61 : vector<8x384xi1>, vector<8x384xf32>
    %c1_i32 = arith.constant 1 : i32
    %63 = vector.broadcast %c1_i32 : i32 to vector<1x384xi32>
    %64 = arith.cmpi sge, %55, %63 : vector<1x384xi32>
    %c1_i32_33 = arith.constant 1 : i32
    %65 = tpu.dynamic_rotate %52 by %c1_i32_33 dim 1 : vector<8x384xf32>, i32 -> vector<8x384xf32>
    %cst_34 = arith.constant 0.000000e+00 : f32
    %66 = vector.shape_cast %64 : vector<1x384xi1> to vector<1x384xi1>
    %67 = vector.broadcast %66 : vector<1x384xi1> to vector<8x384xi1>
    %68 = vector.broadcast %cst_34 : f32 to vector<8x384xf32>
    %69 = arith.select %67, %65, %68 : vector<8x384xi1>, vector<8x384xf32>
    %70 = tpu.concatenate %62, %69, %52 in 0 : vector<8x384xf32>, vector<8x384xf32>, vector<8x384xf32> -> vector<24x384xf32>
    %c192_35 = arith.constant 192 : index
    %c0_36 = arith.constant 0 : index
    %71 = vector.load %arg2[%c192_35, %c0_36] : memref<352x48xf32, #tpu.memory_space<vmem>>, vector<8x24xf32>
    %cst_37 = arith.constant dense<0.000000e+00> : vector<8x384xf32>
    %72 = tpu.matmul %71, %70, %cst_37 {dimension_numbers = #tpu.dot_dimension_numbers<[1], [0], [0], [1], [0, 0, 1, 1], [], []>} : vector<8x24xf32>, vector<24x384xf32>, vector<8x384xf32> -> vector<8x384xf32>
    %c272_38 = arith.constant 272 : index
    %c0_39 = arith.constant 0 : index
    %73 = vector.load %arg2[%c272_38, %c0_39] : memref<352x48xf32, #tpu.memory_space<vmem>>, vector<8x1xf32>
    %74 = vector.broadcast %73 : vector<8x1xf32> to vector<8x384xf32>
    %75 = arith.addf %72, %74 : vector<8x384xf32>
    %cst_40 = arith.constant 0.000000e+00 : f32
    %76 = vector.broadcast %cst_40 : f32 to vector<8x384xf32>
    %77 = arith.maximumf %75, %76 : vector<8x384xf32>
    %c2_i32_41 = arith.constant 2 : i32
    %78 = vector.broadcast %c2_i32_41 : i32 to vector<1x384xi32>
    %79 = arith.cmpi sge, %55, %78 : vector<1x384xi32>
    %c2_i32_42 = arith.constant 2 : i32
    %80 = tpu.dynamic_rotate %77 by %c2_i32_42 dim 1 : vector<8x384xf32>, i32 -> vector<8x384xf32>
    %cst_43 = arith.constant 0.000000e+00 : f32
    %81 = vector.shape_cast %79 : vector<1x384xi1> to vector<1x384xi1>
    %82 = vector.broadcast %81 : vector<1x384xi1> to vector<8x384xi1>
    %83 = vector.broadcast %cst_43 : f32 to vector<8x384xf32>
    %84 = arith.select %82, %80, %83 : vector<8x384xi1>, vector<8x384xf32>
    %c1_i32_44 = arith.constant 1 : i32
    %85 = vector.broadcast %c1_i32_44 : i32 to vector<1x384xi32>
    %86 = arith.cmpi sge, %55, %85 : vector<1x384xi32>
    %c1_i32_45 = arith.constant 1 : i32
    %87 = tpu.dynamic_rotate %77 by %c1_i32_45 dim 1 : vector<8x384xf32>, i32 -> vector<8x384xf32>
    %cst_46 = arith.constant 0.000000e+00 : f32
    %88 = vector.shape_cast %86 : vector<1x384xi1> to vector<1x384xi1>
    %89 = vector.broadcast %88 : vector<1x384xi1> to vector<8x384xi1>
    %90 = vector.broadcast %cst_46 : f32 to vector<8x384xf32>
    %91 = arith.select %89, %87, %90 : vector<8x384xi1>, vector<8x384xf32>
    %92 = tpu.concatenate %84, %91, %77 in 0 : vector<8x384xf32>, vector<8x384xf32>, vector<8x384xf32> -> vector<24x384xf32>
    %c200 = arith.constant 200 : index
    %c0_47 = arith.constant 0 : index
    %93 = vector.load %arg2[%c200, %c0_47] : memref<352x48xf32, #tpu.memory_space<vmem>>, vector<8x24xf32>
    %cst_48 = arith.constant dense<0.000000e+00> : vector<8x384xf32>
    %94 = tpu.matmul %93, %92, %cst_48 {dimension_numbers = #tpu.dot_dimension_numbers<[1], [0], [0], [1], [0, 0, 1, 1], [], []>} : vector<8x24xf32>, vector<24x384xf32>, vector<8x384xf32> -> vector<8x384xf32>
    %c280 = arith.constant 280 : index
    %c0_49 = arith.constant 0 : index
    %95 = vector.load %arg2[%c280, %c0_49] : memref<352x48xf32, #tpu.memory_space<vmem>>, vector<8x1xf32>
    %96 = vector.broadcast %95 : vector<8x1xf32> to vector<8x384xf32>
    %97 = arith.addf %94, %96 : vector<8x384xf32>
    %cst_50 = arith.constant 0.000000e+00 : f32
    %98 = vector.broadcast %cst_50 : f32 to vector<8x384xf32>
    %99 = arith.maximumf %97, %98 : vector<8x384xf32>
    %100 = arith.addf %99, %52 : vector<8x384xf32>
    %cst_51 = arith.constant 0.000000e+00 : f32
    %101 = vector.broadcast %cst_51 : f32 to vector<8x384xf32>
    %102 = arith.maximumf %100, %101 : vector<8x384xf32>
    %c4_i32 = arith.constant 4 : i32
    %103 = vector.broadcast %c4_i32 : i32 to vector<1x384xi32>
    %104 = arith.cmpi sge, %55, %103 : vector<1x384xi32>
    %c4_i32_52 = arith.constant 4 : i32
    %105 = tpu.dynamic_rotate %102 by %c4_i32_52 dim 1 : vector<8x384xf32>, i32 -> vector<8x384xf32>
    %cst_53 = arith.constant 0.000000e+00 : f32
    %106 = vector.shape_cast %104 : vector<1x384xi1> to vector<1x384xi1>
    %107 = vector.broadcast %106 : vector<1x384xi1> to vector<8x384xi1>
    %108 = vector.broadcast %cst_53 : f32 to vector<8x384xf32>
    %109 = arith.select %107, %105, %108 : vector<8x384xi1>, vector<8x384xf32>
    %c2_i32_54 = arith.constant 2 : i32
    %110 = vector.broadcast %c2_i32_54 : i32 to vector<1x384xi32>
    %111 = arith.cmpi sge, %55, %110 : vector<1x384xi32>
    %c2_i32_55 = arith.constant 2 : i32
    %112 = tpu.dynamic_rotate %102 by %c2_i32_55 dim 1 : vector<8x384xf32>, i32 -> vector<8x384xf32>
    %cst_56 = arith.constant 0.000000e+00 : f32
    %113 = vector.shape_cast %111 : vector<1x384xi1> to vector<1x384xi1>
    %114 = vector.broadcast %113 : vector<1x384xi1> to vector<8x384xi1>
    %115 = vector.broadcast %cst_56 : f32 to vector<8x384xf32>
    %116 = arith.select %114, %112, %115 : vector<8x384xi1>, vector<8x384xf32>
    %117 = tpu.concatenate %109, %116, %102 in 0 : vector<8x384xf32>, vector<8x384xf32>, vector<8x384xf32> -> vector<24x384xf32>
    %c208_57 = arith.constant 208 : index
    %c0_58 = arith.constant 0 : index
    %118 = vector.load %arg2[%c208_57, %c0_58] : memref<352x48xf32, #tpu.memory_space<vmem>>, vector<16x24xf32>
    %cst_59 = arith.constant dense<0.000000e+00> : vector<16x384xf32>
    %119 = tpu.matmul %118, %117, %cst_59 {dimension_numbers = #tpu.dot_dimension_numbers<[1], [0], [0], [1], [0, 0, 1, 1], [], []>} : vector<16x24xf32>, vector<24x384xf32>, vector<16x384xf32> -> vector<16x384xf32>
    %c288_60 = arith.constant 288 : index
    %c0_61 = arith.constant 0 : index
    %120 = vector.load %arg2[%c288_60, %c0_61] : memref<352x48xf32, #tpu.memory_space<vmem>>, vector<16x1xf32>
    %121 = vector.broadcast %120 : vector<16x1xf32> to vector<16x384xf32>
    %122 = arith.addf %119, %121 : vector<16x384xf32>
    %cst_62 = arith.constant 0.000000e+00 : f32
    %123 = vector.broadcast %cst_62 : f32 to vector<16x384xf32>
    %124 = arith.maximumf %122, %123 : vector<16x384xf32>
    %c4_i32_63 = arith.constant 4 : i32
    %125 = vector.broadcast %c4_i32_63 : i32 to vector<1x384xi32>
    %126 = arith.cmpi sge, %55, %125 : vector<1x384xi32>
    %c4_i32_64 = arith.constant 4 : i32
    %127 = tpu.dynamic_rotate %124 by %c4_i32_64 dim 1 : vector<16x384xf32>, i32 -> vector<16x384xf32>
    %cst_65 = arith.constant 0.000000e+00 : f32
    %128 = vector.shape_cast %126 : vector<1x384xi1> to vector<1x384xi1>
    %129 = vector.broadcast %128 : vector<1x384xi1> to vector<16x384xi1>
    %130 = vector.broadcast %cst_65 : f32 to vector<16x384xf32>
    %131 = arith.select %129, %127, %130 : vector<16x384xi1>, vector<16x384xf32>
    %c2_i32_66 = arith.constant 2 : i32
    %132 = vector.broadcast %c2_i32_66 : i32 to vector<1x384xi32>
    %133 = arith.cmpi sge, %55, %132 : vector<1x384xi32>
    %c2_i32_67 = arith.constant 2 : i32
    %134 = tpu.dynamic_rotate %124 by %c2_i32_67 dim 1 : vector<16x384xf32>, i32 -> vector<16x384xf32>
    %cst_68 = arith.constant 0.000000e+00 : f32
    %135 = vector.shape_cast %133 : vector<1x384xi1> to vector<1x384xi1>
    %136 = vector.broadcast %135 : vector<1x384xi1> to vector<16x384xi1>
    %137 = vector.broadcast %cst_68 : f32 to vector<16x384xf32>
    %138 = arith.select %136, %134, %137 : vector<16x384xi1>, vector<16x384xf32>
    %139 = tpu.concatenate %131, %138, %124 in 0 : vector<16x384xf32>, vector<16x384xf32>, vector<16x384xf32> -> vector<48x384xf32>
    %c224_69 = arith.constant 224 : index
    %c0_70 = arith.constant 0 : index
    %140 = vector.load %arg2[%c224_69, %c0_70] : memref<352x48xf32, #tpu.memory_space<vmem>>, vector<16x48xf32>
    %cst_71 = arith.constant dense<0.000000e+00> : vector<16x384xf32>
    %141 = tpu.matmul %140, %139, %cst_71 {dimension_numbers = #tpu.dot_dimension_numbers<[1], [0], [0], [1], [0, 0, 1, 1], [], []>} : vector<16x48xf32>, vector<48x384xf32>, vector<16x384xf32> -> vector<16x384xf32>
    %c304_72 = arith.constant 304 : index
    %c0_73 = arith.constant 0 : index
    %142 = vector.load %arg2[%c304_72, %c0_73] : memref<352x48xf32, #tpu.memory_space<vmem>>, vector<16x1xf32>
    %143 = vector.broadcast %142 : vector<16x1xf32> to vector<16x384xf32>
    %144 = arith.addf %141, %143 : vector<16x384xf32>
    %cst_74 = arith.constant 0.000000e+00 : f32
    %145 = vector.broadcast %cst_74 : f32 to vector<16x384xf32>
    %146 = arith.maximumf %144, %145 : vector<16x384xf32>
    %c240_75 = arith.constant 240 : index
    %c0_76 = arith.constant 0 : index
    %147 = vector.load %arg2[%c240_75, %c0_76] : memref<352x48xf32, #tpu.memory_space<vmem>>, vector<16x8xf32>
    %cst_77 = arith.constant dense<0.000000e+00> : vector<16x384xf32>
    %148 = tpu.matmul %147, %102, %cst_77 {dimension_numbers = #tpu.dot_dimension_numbers<[1], [0], [0], [1], [0, 0, 1, 1], [], []>} : vector<16x8xf32>, vector<8x384xf32>, vector<16x384xf32> -> vector<16x384xf32>
    %149 = arith.addf %146, %148 : vector<16x384xf32>
    %c320_78 = arith.constant 320 : index
    %c0_79 = arith.constant 0 : index
    %150 = vector.load %arg2[%c320_78, %c0_79] : memref<352x48xf32, #tpu.memory_space<vmem>>, vector<16x1xf32>
    %151 = vector.broadcast %150 : vector<16x1xf32> to vector<16x384xf32>
    %152 = arith.addf %149, %151 : vector<16x384xf32>
    %c256_80 = arith.constant 256 : index
    %c0_81 = arith.constant 0 : index
    %153 = vector.load %arg2[%c256_80, %c0_81] : memref<352x48xf32, #tpu.memory_space<vmem>>, vector<8x16xf32>
    %cst_82 = arith.constant dense<0.000000e+00> : vector<8x384xf32>
    %154 = tpu.matmul %153, %152, %cst_82 {dimension_numbers = #tpu.dot_dimension_numbers<[1], [0], [0], [1], [0, 0, 1, 1], [], []>} : vector<8x16xf32>, vector<16x384xf32>, vector<8x384xf32> -> vector<8x384xf32>
    %c336_83 = arith.constant 336 : index
    %c0_84 = arith.constant 0 : index
    %155 = vector.load %arg2[%c336_83, %c0_84] : memref<352x48xf32, #tpu.memory_space<vmem>>, vector<8x1xf32>
    %156 = vector.broadcast %155 : vector<8x1xf32> to vector<8x384xf32>
    %157 = arith.addf %154, %156 : vector<8x384xf32>
    %cst_85 = arith.constant 0.000000e+00 : f32
    %158 = vector.broadcast %cst_85 : f32 to vector<8x384xf32>
    %159 = arith.maximumf %157, %158 : vector<8x384xf32>
    %c14_i32 = arith.constant 14 : i32
    %160 = vector.broadcast %c14_i32 : i32 to vector<1x384xi32>
    %161 = arith.cmpi sle, %55, %160 : vector<1x384xi32>
    %c383_i32 = arith.constant 383 : i32
    %162 = tpu.dynamic_rotate %159 by %c383_i32 dim 1 : vector<8x384xf32>, i32 -> vector<8x384xf32>
    %cst_86 = arith.constant 0.000000e+00 : f32
    %163 = vector.shape_cast %161 : vector<1x384xi1> to vector<1x384xi1>
    %164 = vector.broadcast %163 : vector<1x384xi1> to vector<8x384xi1>
    %165 = vector.broadcast %cst_86 : f32 to vector<8x384xf32>
    %166 = arith.select %164, %162, %165 : vector<8x384xi1>, vector<8x384xf32>
    %167 = tpu.concatenate %159, %166 in 0 : vector<8x384xf32>, vector<8x384xf32> -> vector<16x384xf32>
    %c264 = arith.constant 264 : index
    %c0_87 = arith.constant 0 : index
    %168 = vector.load %arg2[%c264, %c0_87] : memref<352x48xf32, #tpu.memory_space<vmem>>, vector<1x16xf32>
    %cst_88 = arith.constant dense<0.000000e+00> : vector<1x384xf32>
    %169 = tpu.matmul %168, %167, %cst_88 {dimension_numbers = #tpu.dot_dimension_numbers<[1], [0], [0], [1], [0, 0, 1, 1], [], []>} : vector<1x16xf32>, vector<16x384xf32>, vector<1x384xf32> -> vector<1x384xf32>
    %c344 = arith.constant 344 : index
    %c0_89 = arith.constant 0 : index
    %170 = vector.load %arg2[%c344, %c0_89] : memref<352x48xf32, #tpu.memory_space<vmem>>, vector<1x1xf32>
    %171 = vector.broadcast %170 : vector<1x1xf32> to vector<1x384xf32>
    %172 = arith.addf %169, %171 : vector<1x384xf32>
    %c0_90 = arith.constant 0 : index
    %c0_91 = arith.constant 0 : index
    %c0_92 = arith.constant 0 : index
    %173 = vector.load %arg3[%c0_90, %c0_91, %c0_92] : memref<1x1x384xf32, #tpu.memory_space<vmem>>, vector<1x1x384xf32>
    %174 = vector.shape_cast %173 : vector<1x1x384xf32> to vector<1x384xf32>
    %175 = vector.shape_cast %172 : vector<1x384xf32> to vector<1x1x384xf32>
    tpu.vector_store %arg3[%c0_90, %c0_91, %c0_92], %175 {strides = array<i32>} : memref<1x1x384xf32, #tpu.memory_space<vmem>>, vector<1x1x384xf32>,
    return
  }
  func.func @transform_0(%arg0: i32) -> (i32, i32, i32) {
    %c0_i32 = arith.constant 0 : i32
    %c0_i32_0 = arith.constant 0 : i32
    %c0_i32_1 = arith.constant 0 : i32
    return %arg0, %c0_i32, %c0_i32_0 : i32, i32, i32
  }
  func.func @transform_1(%arg0: i32) -> (i32, i32) {
    %c0_i32 = arith.constant 0 : i32
    %c0_i32_0 = arith.constant 0 : i32
    %c0_i32_1 = arith.constant 0 : i32
    return %c0_i32, %c0_i32_0 : i32, i32
  }
  func.func @transform_2(%arg0: i32) -> (i32, i32, i32) {
    %c0_i32 = arith.constant 0 : i32
    %c0_i32_0 = arith.constant 0 : i32
    %c0_i32_1 = arith.constant 0 : i32
    return %arg0, %c0_i32, %c0_i32_0 : i32, i32, i32
  }
}

</mosaic_0001>

<llo_original>
// kernel: gcn_tcn_forward.1
$region0: #{gcn_tcn_forward.1}
  #allocation0 [shape = 'u32[]', space=smem, size = 0x4, offset = 0x4, fixed_abs, tag = 'smem constant byte address 0x4 - core index']
  #allocation1 [shape = 'u32[144,128]{1,0:T(1,128)}', space=vmem, size = 0x12000, scoped, tag = 'internal scratch']
  #allocation2 [shape = 'f32[8,384]{1,0:T(8,128)}', space=vmem, size = 0x3000, scoped, tag = 'scratch operand']
  %s0 = inlined_call_operand.vmem [shape: f32[2,24,16], index: 0, kind: input, shape index: {}]
  %s1 = inlined_call_operand.vmem [shape: f32[352,48], index: 1, kind: input, shape index: {}]
  %s2 = inlined_call_operand.vmem [shape: f32[2,1,384], index: 2, kind: output, shape index: {}]
  %s3 = sld [smem:[#allocation0]]
  $region41: #{gcn_tcn_forward.1} parent=0
    _
  %s5 = ssub.s32 1, %s3
  %s6 = scalar_select 0, %s5, %s3
  loop: start=0, step=1, limit=4
  $region2: #{gcn_tcn_forward.1} parent=0 // loop_pre_header
    _
  $region3: #{gcn_tcn_forward.1} parent=0 // loop_header
    %s8 = sphi 0, %s12
    %p9 = scmp.ge.s32.totalorder %s8, 4
    %s18 = sphi 0, %s20
    %s21 = sphi 0, %s18
    %s22 = sphi 0, %s21
    %s38 = sphi 0, %s22
    %s42 = sphi 0, %s42
    %s44 = sphi 0, %s42
    %s45 = sphi 0, %s44
    %s59 = sphi 0, %s45
    %s65 = sphi 0, %s67
    %s68 = sphi 0, %s65
    %s69 = sphi 0, %s68
    %s85 = sphi 0, %s69
  $region4: #{gcn_tcn_forward.1} parent=0 // loop_header_branch
    %11 = sbr.rel (%p9) target = $region8
  $region5: #{gcn_tcn_forward.1} parent=0 // loop_body
    %s13 = ssub.s32 %s8, 1
    %s14 = ssub.s32 %s8, 2
    %s15 = sadd.s32 %s8, 1
    %s16 = ssub.s32 %s8, %s15
    %p17 = scmp.eq.s32.totalorder %s16, 0
    %s19 = sadd.s32 %s18, 1
    %s20 = scalar_select %p17, %s18, %s19
    %p23 = pneg %p17
    %p24 = scmp.eq.s32.totalorder %s8, 1
    %p25 = por %p23, %p24
    %p26 = scmp.ne.s32.totalorder %s18, %s21
    %p27 = scmp.eq.s32.totalorder %s8, 0
    %p28 = por %p26, %p27
    %p29 = scmp.ne.s32.totalorder %s18, %s21
    %p30 = scmp.eq.s32.totalorder %s13, 1
    %p31 = por %p29, %p30
    %p32 = scmp.ne.s32.totalorder %s21, %s22
    %p33 = scmp.eq.s32.totalorder %s13, 0
    %p34 = por %p32, %p33
    %p35 = scmp.ne.s32.totalorder %s21, %s22
    %p36 = scmp.eq.s32.totalorder %s14, 1
    %p37 = por %p35, %p36
    %p39 = scmp.ne.s32.totalorder %s22, %s38
    %p40 = scmp.eq.s32.totalorder %s14, 0
    %p41 = por %p39, %p40
    %s43 = sadd.s32 %s42, 1
    %p46 = scmp.eq.s32.totalorder %s8, 1
    %p47 = scmp.ne.s32.totalorder %s42, %s44
    %p48 = scmp.eq.s32.totalorder %s8, 0
    %p49 = por %p47, %p48
    %p50 = scmp.ne.s32.totalorder %s42, %s44
    %p51 = scmp.eq.s32.totalorder %s13, 1
    %p52 = por %p50, %p51
    %p53 = scmp.ne.s32.totalorder %s44, %s45
    %p54 = scmp.eq.s32.totalorder %s13, 0
    %p55 = por %p53, %p54
    %p56 = scmp.ne.s32.totalorder %s44, %s45
    %p57 = scmp.eq.s32.totalorder %s14, 1
    %p58 = por %p56, %p57
    %p60 = scmp.ne.s32.totalorder %s45, %s59
    %p61 = scmp.eq.s32.totalorder %s14, 0
    %p62 = por %p60, %p61
    %s63 = ssub.s32 %s8, %s15
    %p64 = scmp.eq.s32.totalorder %s63, 0
    %s66 = sadd.s32 %s65, 1
    %s67 = scalar_select %p64, %s65, %s66
    %p70 = pneg %p64
    %p71 = scmp.eq.s32.totalorder %s8, 1
    %p72 = por %p70, %p71
    %p73 = scmp.ne.s32.totalorder %s65, %s68
    %p74 = scmp.eq.s32.totalorder %s8, 0
    %p75 = por %p73, %p74
    %p76 = scmp.ne.s32.totalorder %s65, %s68
    %p77 = scmp.eq.s32.totalorder %s13, 1
    %p78 = por %p76, %p77
    %p79 = scmp.ne.s32.totalorder %s68, %s69
    %p80 = scmp.eq.s32.totalorder %s13, 0
    %p81 = por %p79, %p80
    %p82 = scmp.ne.s32.totalorder %s68, %s69
    %p83 = scmp.eq.s32.totalorder %s14, 1
    %p84 = por %p82, %p83
    %p86 = scmp.ne.s32.totalorder %s69, %s85
    %p87 = scmp.eq.s32.totalorder %s14, 0
    %p88 = por %p86, %p87
    %p89 = scmp.le.s32.totalorder 1, %s8
    %p90 = scmp.lt.s32.totalorder %s8, 3
    %p91 = pnand %p89, %p90
    %p92 = pneg %p91
    // Predicated region
    $region9: #{gcn_tcn_forward.1} parent=5 // pred_check
      _
    $region10: #{gcn_tcn_forward.1} parent=5 // pred_check_branch
      %94 = sbr.rel (%p91) target = $region12
    $region11: #{gcn_tcn_forward.1} parent=5 // pred_region
      %s95 = ssub.s32 %s8, 1
      // Predicated region
      $region13: #{gcn_tcn_forward.1} parent=11 // pred_check
        %p96 = pneg %p55
      $region14: #{gcn_tcn_forward.1} parent=11 // pred_check_branch
        %98 = sbr.rel (%p96) target = $region16
      $region15: #{gcn_tcn_forward.1} parent=11 // pred_region
        _
      $region16: #{gcn_tcn_forward.1} parent=11 // pred_fallthru
        _
    $region12: #{gcn_tcn_forward.1} parent=5 // pred_fallthru
      _
    %p99 = scmp.lt.s32.totalorder %s8, 2
    // Predicated region
    $region17: #{gcn_tcn_forward.1} parent=5 // pred_check
      %p100 = pneg %p99
    $region18: #{gcn_tcn_forward.1} parent=5 // pred_check_branch
      %102 = sbr.rel (%p100) target = $region20
    $region19: #{gcn_tcn_forward.1} parent=5 // pred_region
      // Predicated region
      $region21: #{gcn_tcn_forward.1} parent=19 // pred_check
        %p103 = pneg %p28
      $region22: #{gcn_tcn_forward.1} parent=19 // pred_check_branch
        %105 = sbr.rel (%p103) target = $region24
      $region23: #{gcn_tcn_forward.1} parent=19 // pred_region
        %p106 = scmp.lt.s32.totalorder %s8, 1
        %s107 = scalar_select %p106, %s8, 1
        %s108 = smul.addr %s107, 3
        %s109 = smul.addr %s108, 8
        %s110 = scalar_lea.vmem %s0, %s109
      $region24: #{gcn_tcn_forward.1} parent=19 // pred_fallthru
        _
    $region20: #{gcn_tcn_forward.1} parent=5 // pred_fallthru
      _
    %p111 = scmp.le.s32.totalorder 1, %s8
    %p112 = scmp.lt.s32.totalorder %s8, 3
    %p113 = pnand %p111, %p112
    %p114 = pneg %p113
    // Predicated region
    $region25: #{gcn_tcn_forward.1} parent=5 // pred_check
      _
    $region26: #{gcn_tcn_forward.1} parent=5 // pred_check_branch
      %116 = sbr.rel (%p113) target = $region28
    $region27: #{gcn_tcn_forward.1} parent=5 // pred_region
      %s117 = ssub.s32 %s8, 1
      %p118 = scmp.lt.s32.totalorder %s13, 1
      %s119 = scalar_select %p118, %s13, 1
      %s120 = smul.addr %s119, 3
      %s121 = smul.addr %s120, 8
      %s122 = scalar_lea.vmem %s0, %s121
      %p123 = pneg %p34
      %p124 = pneg %p31
      %p125 = pneg %p55
      %p126 = pneg %p52
      %p127 = pneg %p81
      %p128 = pneg %p78
      %p129 = scmp.lt.s32.totalorder %s13, 1
      %s130 = scalar_select %p129, %s13, 1
      %s131 = smul.addr %s130, 3
      %s132 = scalar_lea.vmem %s2, %s131
      %p133 = scmp.lt.s32.totalorder %s13, 1
      %s134 = scalar_select %p133, %s13, 1
      %s135 = smul.addr %s134, 3
      %s136 = smul.addr %s135, 8
      %s137 = scalar_lea.vmem %s0, %s136
      %p138 = scmp.lt.s32.totalorder %s13, 1
      %s139 = scalar_select %p138, %s13, 1
      %s140 = smul.addr %s139, 3
      %s141 = scalar_lea.vmem %s2, %s140
      %v142 = vld [vmem:[%s1] sm:$0xff]
      %v143 = vld [vmem:[%s1 + $0x8] sm:$0xff]
      %v144 = vld [vmem:[%s1 + $0x10] sm:$0xff]
      %v145 = vld [vmem:[%s1 + $0x18] sm:$0xff]
      %v146 = vld [vmem:[%s1 + $0x20] sm:$0xff]
      %v147 = vld [vmem:[%s1 + $0x28] sm:$0xff]
      %v148 = vld [vmem:[%s1 + $0x30] sm:$0xff]
      %v149 = vld [vmem:[%s1 + $0x38] sm:$0xff]
      %v150 = vld [vmem:[%s1 + $0x40] sm:$0xff]
      %v151 = vld [vmem:[%s1 + $0x48] sm:$0xff]
      %v152 = vld [vmem:[%s1 + $0x50] sm:$0xff]
      %v153 = vld [vmem:[%s1 + $0x58] sm:$0xff]
      %v154 = vld [vmem:[%s1 + $0x60] sm:$0xff]
      %v155 = vld [vmem:[%s1 + $0x68] sm:$0xff]
      %v156 = vld [vmem:[%s1 + $0x70] sm:$0xff]
      %v157 = vld [vmem:[%s1 + $0x78] sm:$0xff]
      %v158 = vld [vmem:[%s1 + $0x80] sm:$0xff]
      %v159 = vld [vmem:[%s1 + $0x88] sm:$0xff]
      %v160 = vld [vmem:[%s1 + $0x90] sm:$0xff]
      %v161 = vld [vmem:[%s1 + $0x98] sm:$0xff]
      %v162 = vld [vmem:[%s1 + $0xa0] sm:$0xff]
      %v163 = vld [vmem:[%s1 + $0xa8] sm:$0xff]
      %v164 = vld [vmem:[%s1 + $0xb0] sm:$0xff]
      %v165 = vld [vmem:[%s1 + $0xb8] sm:$0xff]
      %v166 = vld [vmem:[%s137] sm:$0xff]
      %v167 = vld [vmem:[%s137 + $0x8] sm:$0xff]
      %v168 = vld [vmem:[%s137 + $0x10] sm:$0xff]
      %vm169 = vcmask 195584
      %v171 = vsel %vm169, %v142, 0
      %v174 = vsel %vm169, %v143, 0
      %v177 = vsel %vm169, %v144, 0
      %v180 = vsel %vm169, %v145, 0
      %v183 = vsel %vm169, %v146, 0
      %v186 = vsel %vm169, %v147, 0
      %v189 = vsel %vm169, %v148, 0
      %v192 = vsel %vm169, %v149, 0
      %v195 = vsel %vm169, %v150, 0
      %v198 = vsel %vm169, %v151, 0
      %v201 = vsel %vm169, %v152, 0
      %v204 = vsel %vm169, %v153, 0
      %v207 = vsel %vm169, %v154, 0
      %v210 = vsel %vm169, %v155, 0
      %v213 = vsel %vm169, %v156, 0
      %v216 = vsel %vm169, %v157, 0
      %v219 = vsel %vm169, %v158, 0
      %v222 = vsel %vm169, %v159, 0
      %v225 = vsel %vm169, %v160, 0
      %v228 = vsel %vm169, %v161, 0
      %v231 = vsel %vm169, %v162, 0
      %v234 = vsel %vm169, %v163, 0
      %v237 = vsel %vm169, %v164, 0
      %v240 = vsel %vm169, %v165, 0
      %242 = vmatprep.subr.mxu0 0.0
      %243 = vmatpush1.msra.mxu0 0.0
      %244 = vmatprep.subr.mxu0 0.0
      %245 = vmatpush1.msra.mxu0 0.0
      %246 = vmatprep.subr.mxu0 0.0
      %247 = vmatpush1.msra.mxu0 0.0
      %248 = vmatprep.subr.mxu0 0.0
      %249 = vmatpush1.msra.mxu0 0.0
      %250 = vmatprep.subr.mxu0 0.0
      %251 = vmatpush1.msra.mxu0 0.0
      %252 = vmatprep.subr.mxu0 0.0
      %253 = vmatpush1.msra.mxu0 0.0
      %254 = vmatprep.subr.mxu0 0.0
      %255 = vmatpush1.msra.mxu0 0.0
      %256 = vmatprep.subr.mxu0 0.0
      %257 = vmatpush1.msra.mxu0 0.0
      %258 = vmatprep.subr.mxu0 0.0
      %259 = vmatpush1.msra.mxu0 0.0
      %260 = vmatprep.subr.mxu0 0.0
      %261 = vmatpush1.msra.mxu0 0.0
      %262 = vmatprep.subr.mxu0 0.0
      %263 = vmatpush1.msra.mxu0 0.0
      %264 = vmatprep.subr.mxu0 0.0
      %265 = vmatpush1.msra.mxu0 0.0
      %266 = vmatprep.subr.mxu0 0.0
      %267 = vmatpush1.msra.mxu0 0.0
      %268 = vmatprep.subr.mxu0 0.0
      %269 = vmatpush1.msra.mxu0 %v168
      %270 = vmatprep.subr.mxu0 0.0
      %271 = vmatpush1.msra.mxu0 %v167
      %272 = vmatprep.subr.mxu0 0.0
      %273 = vmatpush1.msra.mxu0 %v166
      %274 = vmatprep.subr.mxu0 0.0
      %275 = vmatpush2.msra.mxu0 0.0
      %276 = vmatprep.subr.mxu0 0.0
      %277 = vmatpush2.msra.mxu0 0.0
      %278 = vmatprep.subr.mxu0 0.0
      %279 = vmatpush2.msra.mxu0 0.0
      %280 = vmatprep.subr.mxu0 0.0
      %281 = vmatpush2.msra.mxu0 0.0
      %282 = vmatprep.subr.mxu0 0.0
      %283 = vmatpush2.msra.mxu0 0.0
      %284 = vmatprep.subr.mxu0 0.0
      %285 = vmatpush2.msra.mxu0 0.0
      %286 = vmatprep.subr.mxu0 0.0
      %287 = vmatpush2.msra.mxu0 0.0
      %288 = vmatprep.subr.mxu0 0.0
      %289 = vmatpush2.msra.mxu0 0.0
      %290 = vmatprep.subr.mxu0 0.0
      %291 = vmatpush2.msra.mxu0 0.0
      %292 = vmatprep.subr.mxu0 0.0
      %293 = vmatpush2.msra.mxu0 0.0
      %294 = vmatprep.subr.mxu0 0.0
      %295 = vmatpush2.msra.mxu0 0.0
      %296 = vmatprep.subr.mxu0 0.0
      %297 = vmatpush2.msra.mxu0 0.0
      %298 = vmatprep.subr.mxu0 0.0
      %299 = vmatpush2.msra.mxu0 0.0
      %300 = vmatprep.subr.mxu0 0.0
      %301 = vmatpush2.msra.mxu0 0.0
      %302 = vmatprep.subr.mxu0 0.0
      %303 = vmatpush2.msra.mxu0 0.0
      %304 = vmatprep.subr.mxu0 0.0
      %305 = vmatpush2.msra.mxu0 0.0
      %306 = vmatprep.mubr.f32.mxu0 0.0
      %307 = vmatmul.mubr.f32.gmra.mxu0 %v171
      %v308 = vpop.f32.mrf.mxu0
      %v309 = vadd.f32 0.0, %v308
      %v310 = vpop.f32.mrf.mxu0
      %311 = vmatprep.mubr.f32.mxu0 0.0
      %312 = vmatmul.mubr.f32.gmra.mxu0 %v174
      %v313 = vpop.f32.mrf.mxu0
      %v314 = vadd.f32 0.0, %v313
      %v315 = vpop.f32.mrf.mxu0
      %316 = vmatprep.mubr.f32.mxu0 0.0
      %317 = vmatmul.mubr.f32.gmra.mxu0 %v177
      %v318 = vpop.f32.mrf.mxu0
      %v319 = vadd.f32 0.0, %v318
      %v320 = vpop.f32.mrf.mxu0
      %321 = vmatprep.mubr.f32.mxu0 0.0
      %322 = vmatmul.mubr.f32.gmra.mxu0 %v180
      %v323 = vpop.f32.mrf.mxu0
      %v324 = vadd.f32 0.0, %v323
      %v325 = vpop.f32.mrf.mxu0
      %326 = vmatprep.mubr.f32.mxu0 0.0
      %327 = vmatmul.mubr.f32.gmra.mxu0 %v183
      %v328 = vpop.f32.mrf.mxu0
      %v329 = vadd.f32 0.0, %v328
      %v330 = vpop.f32.mrf.mxu0
      %331 = vmatprep.mubr.f32.mxu0 0.0
      %332 = vmatmul.mubr.f32.gmra.mxu0 %v186
      %v333 = vpop.f32.mrf.mxu0
      %v334 = vadd.f32 0.0, %v333
      %v335 = vpop.f32.mrf.mxu0
      %336 = vmatprep.mubr.f32.mxu0 0.0
      %337 = vmatmul.mubr.f32.gmra.mxu0 %v189
      %v338 = vpop.f32.mrf.mxu0
      %v339 = vadd.f32 0.0, %v338
      %v340 = vpop.f32.mrf.mxu0
      %341 = vmatprep.mubr.f32.mxu0 0.0
      %342 = vmatmul.mubr.f32.gmra.mxu0 %v192
      %v343 = vpop.f32.mrf.mxu0
      %v344 = vadd.f32 0.0, %v343
      %v345 = vpop.f32.mrf.mxu0
      %346 = vmatprep.mubr.f32.mxu0 0.0
      %347 = vmatmul.mubr.f32.gmra.mxu0 %v195
      %v348 = vpop.f32.mrf.mxu0
      %v349 = vadd.f32 0.0, %v348
      %v350 = vpop.f32.mrf.mxu0
      %351 = vmatprep.mubr.f32.mxu0 0.0
      %352 = vmatmul.mubr.f32.gmra.mxu0 %v198
      %v353 = vpop.f32.mrf.mxu0
      %v354 = vadd.f32 0.0, %v353
      %v355 = vpop.f32.mrf.mxu0
      %356 = vmatprep.mubr.f32.mxu0 0.0
      %357 = vmatmul.mubr.f32.gmra.mxu0 %v201
      %v358 = vpop.f32.mrf.mxu0
      %v359 = vadd.f32 0.0, %v358
      %v360 = vpop.f32.mrf.mxu0
      %361 = vmatprep.mubr.f32.mxu0 0.0
      %362 = vmatmul.mubr.f32.gmra.mxu0 %v204
      %v363 = vpop.f32.mrf.mxu0
      %v364 = vadd.f32 0.0, %v363
      %v365 = vpop.f32.mrf.mxu0
      %366 = vmatprep.mubr.f32.mxu0 0.0
      %367 = vmatmul.mubr.f32.gmra.mxu0 %v207
      %v368 = vpop.f32.mrf.mxu0
      %v369 = vadd.f32 0.0, %v368
      %v370 = vpop.f32.mrf.mxu0
      %371 = vmatprep.mubr.f32.mxu0 0.0
      %372 = vmatmul.mubr.f32.gmra.mxu0 %v210
      %v373 = vpop.f32.mrf.mxu0
      %v374 = vadd.f32 0.0, %v373
      %v375 = vpop.f32.mrf.mxu0
      %376 = vmatprep.mubr.f32.mxu0 0.0
      %377 = vmatmul.mubr.f32.gmra.mxu0 %v213
      %v378 = vpop.f32.mrf.mxu0
      %v379 = vadd.f32 0.0, %v378
      %v380 = vpop.f32.mrf.mxu0
      %381 = vmatprep.mubr.f32.mxu0 0.0
      %382 = vmatmul.mubr.f32.gmra.mxu0 %v216
      %v383 = vpop.f32.mrf.mxu0
      %v384 = vadd.f32 0.0, %v383
      %v385 = vpop.f32.mrf.mxu0
      %386 = vmatprep.mubr.f32.mxu0 0.0
      %387 = vmatmul.mubr.f32.gmra.mxu0 %v219
      %v388 = vpop.f32.mrf.mxu0
      %v389 = vadd.f32 0.0, %v388
      %v390 = vpop.f32.mrf.mxu0
      %391 = vmatprep.mubr.f32.mxu0 0.0
      %392 = vmatmul.mubr.f32.gmra.mxu0 %v222
      %v393 = vpop.f32.mrf.mxu0
      %v394 = vadd.f32 0.0, %v393
      %v395 = vpop.f32.mrf.mxu0
      %396 = vmatprep.mubr.f32.mxu0 0.0
      %397 = vmatmul.mubr.f32.gmra.mxu0 %v225
      %v398 = vpop.f32.mrf.mxu0
      %v399 = vadd.f32 0.0, %v398
      %v400 = vpop.f32.mrf.mxu0
      %401 = vmatprep.mubr.f32.mxu0 0.0
      %402 = vmatmul.mubr.f32.gmra.mxu0 %v228
      %v403 = vpop.f32.mrf.mxu0
      %v404 = vadd.f32 0.0, %v403
      %v405 = vpop.f32.mrf.mxu0
      %406 = vmatprep.mubr.f32.mxu0 0.0
      %407 = vmatmul.mubr.f32.gmra.mxu0 %v231
      %v408 = vpop.f32.mrf.mxu0
      %v409 = vadd.f32 0.0, %v408
      %v410 = vpop.f32.mrf.mxu0
      %411 = vmatprep.mubr.f32.mxu0 0.0
      %412 = vmatmul.mubr.f32.gmra.mxu0 %v234
      %v413 = vpop.f32.mrf.mxu0
      %v414 = vadd.f32 0.0, %v413
      %v415 = vpop.f32.mrf.mxu0
      %416 = vmatprep.mubr.f32.mxu0 0.0
      %417 = vmatmul.mubr.f32.gmra.mxu0 %v237
      %v418 = vpop.f32.mrf.mxu0
      %v419 = vadd.f32 0.0, %v418
      %v420 = vpop.f32.mrf.mxu0
      %421 = vmatprep.mubr.f32.mxu0 0.0
      %422 = vmatmul.mubr.f32.gmra.mxu0 %v240
      %v423 = vpop.f32.mrf.mxu0
      %v424 = vadd.f32 0.0, %v423
      %v425 = vpop.f32.mrf.mxu0
      %426 = vdwg.mxu0
      %vm427 = vcmask 130048
      %428 = vst.msk [vmem:[#allocation2] sm:$0xff] %vm427, %v309
      %430 = vrot.lane.b32.xlu0 %v314, 16
      %v431 = vpop.permute.xlu0 %430
      %vm433 = vcmask 261248
      %434 = vst.msk [vmem:[#allocation2] sm:$0xff] %vm433, %v431
      %436 = vrot.lane.b32.xlu0 %v319, 32
      %v437 = vpop.permute.xlu0 %436
      %vm439 = vcmask 392448
      %440 = vst.msk [vmem:[#allocation2] sm:$0xff] %vm439, %v437
      %442 = vrot.lane.b32.xlu0 %v324, 48
      %v443 = vpop.permute.xlu0 %442
      %vm445 = vcmask 523648
      %446 = vst.msk [vmem:[#allocation2] sm:$0xff] %vm445, %v443
      %448 = vrot.lane.b32.xlu0 %v329, 64
      %v449 = vpop.permute.xlu0 %448
      %vm451 = vcmask 654848
      %452 = vst.msk [vmem:[#allocation2] sm:$0xff] %vm451, %v449
      %454 = vrot.lane.b32.xlu0 %v334, 80
      %v455 = vpop.permute.xlu0 %454
      %vm457 = vcmask 786048
      %458 = vst.msk [vmem:[#allocation2] sm:$0xff] %vm457, %v455
      %460 = vrot.lane.b32.xlu0 %v339, 96
      %v461 = vpop.permute.xlu0 %460
      %vm463 = vcmask 917248
      %464 = vst.msk [vmem:[#allocation2] sm:$0xff] %vm463, %v461
      %466 = vrot.lane.b32.xlu0 %v344, 112
      %v467 = vpop.permute.xlu0 %466
      %vm469 = vcmask 1048448
      %470 = vst.msk [vmem:[#allocation2] sm:$0xff] %vm469, %v467
      %471 = vst.msk [vmem:[#allocation2 + $0x8] sm:$0xff] %vm427, %v349
      %473 = vrot.lane.b32.xlu0 %v354, 16
      %v474 = vpop.permute.xlu0 %473
      %476 = vst.msk [vmem:[#allocation2 + $0x8] sm:$0xff] %vm433, %v474
      %478 = vrot.lane.b32.xlu0 %v359, 32
      %v479 = vpop.permute.xlu0 %478
      %481 = vst.msk [vmem:[#allocation2 + $0x8] sm:$0xff] %vm439, %v479
      %483 = vrot.lane.b32.xlu0 %v364, 48
      %v484 = vpop.permute.xlu0 %483
      %486 = vst.msk [vmem:[#allocation2 + $0x8] sm:$0xff] %vm445, %v484
      %488 = vrot.lane.b32.xlu0 %v369, 64
      %v489 = vpop.permute.xlu0 %488
      %491 = vst.msk [vmem:[#allocation2 + $0x8] sm:$0xff] %vm451, %v489
      %493 = vrot.lane.b32.xlu0 %v374, 80
      %v494 = vpop.permute.xlu0 %493
      %496 = vst.msk [vmem:[#allocation2 + $0x8] sm:$0xff] %vm457, %v494
      %498 = vrot.lane.b32.xlu0 %v379, 96
      %v499 = vpop.permute.xlu0 %498
      %501 = vst.msk [vmem:[#allocation2 + $0x8] sm:$0xff] %vm463, %v499
      %503 = vrot.lane.b32.xlu0 %v384, 112
      %v504 = vpop.permute.xlu0 %503
      %506 = vst.msk [vmem:[#allocation2 + $0x8] sm:$0xff] %vm469, %v504
      %507 = vst.msk [vmem:[#allocation2 + $0x10] sm:$0xff] %vm427, %v389
      %509 = vrot.lane.b32.xlu0 %v394, 16
      %v510 = vpop.permute.xlu0 %509
      %512 = vst.msk [vmem:[#allocation2 + $0x10] sm:$0xff] %vm433, %v510
      %514 = vrot.lane.b32.xlu0 %v399, 32
      %v515 = vpop.permute.xlu0 %514
      %517 = vst.msk [vmem:[#allocation2 + $0x10] sm:$0xff] %vm439, %v515
      %519 = vrot.lane.b32.xlu0 %v404, 48
      %v520 = vpop.permute.xlu0 %519
      %522 = vst.msk [vmem:[#allocation2 + $0x10] sm:$0xff] %vm445, %v520
      %524 = vrot.lane.b32.xlu0 %v409, 64
      %v525 = vpop.permute.xlu0 %524
      %527 = vst.msk [vmem:[#allocation2 + $0x10] sm:$0xff] %vm451, %v525
      %529 = vrot.lane.b32.xlu0 %v414, 80
      %v530 = vpop.permute.xlu0 %529
      %532 = vst.msk [vmem:[#allocation2 + $0x10] sm:$0xff] %vm457, %v530
      %534 = vrot.lane.b32.xlu0 %v419, 96
      %v535 = vpop.permute.xlu0 %534
      %537 = vst.msk [vmem:[#allocation2 + $0x10] sm:$0xff] %vm463, %v535
      %539 = vrot.lane.b32.xlu0 %v424, 112
      %v540 = vpop.permute.xlu0 %539
      %542 = vst.msk [vmem:[#allocation2 + $0x10] sm:$0xff] %vm469, %v540
      %v543 = vld [vmem:[#allocation2] sm:$0xff]
      %v544 = vld [vmem:[#allocation2 + $0x8] sm:$0xff]
      %v545 = vld [vmem:[#allocation2 + $0x10] sm:$0xff]
      %v546 = vlaneseq
      %v547 = vand.u32 %v546, 127
      %v548 = vadd.s32 %v547, 128
      %v549 = vadd.s32 %v547, 256
      %v550 = vand.u32 %v547, 15
      %v551 = vand.u32 %v548, 15
      %v552 = vand.u32 %v549, 15
      %vm553 = vcmp.ge.s32.totalorder %v550, 2
      %vm554 = vcmp.ge.s32.totalorder %v551, 2
      %vm555 = vcmp.ge.s32.totalorder %v552, 2
      %556 = vrot.lane.b32.xlu0 %v543, 2
      %v557 = vpop.permute.xlu0 %556
      %558 = vrot.lane.b32.xlu0 %v544, 2
      %v559 = vpop.permute.xlu0 %558
      %560 = vrot.lane.b32.xlu0 %v545, 2
      %v561 = vpop.permute.xlu0 %560
      %vm562 = vcmp.lt.s32.totalorder %v547, 2
      %v563 = vsel %vm562, %v559, %v561
      %v564 = vsel %vm562, %v557, %v559
      %v565 = vsel %vm562, %v561, %v557
      %v566 = vsel %vm553, 1, 0
      %v567 = vsel %vm554, 1, 0
      %v568 = vsel %vm555, 1, 0
      %vm569 = vcmp.eq.s32.totalorder %v566, 1
      %vm570 = vcmp.eq.s32.totalorder %v567, 1
      %vm571 = vcmp.eq.s32.totalorder %v568, 1
      %v572 = vsel %vm569, %v565, 0.0
      %v573 = vsel %vm570, %v564, 0.0
      %v574 = vsel %vm571, %v563, 0.0
      %vm575 = vcmp.ge.s32.totalorder %v550, 1
      %vm576 = vcmp.ge.s32.totalorder %v551, 1
      %vm577 = vcmp.ge.s32.totalorder %v552, 1
      %578 = vrot.lane.b32.xlu0 %v543, 1
      %v579 = vpop.permute.xlu0 %578
      %580 = vrot.lane.b32.xlu0 %v544, 1
      %v581 = vpop.permute.xlu0 %580
      %582 = vrot.lane.b32.xlu0 %v545, 1
      %v583 = vpop.permute.xlu0 %582
      %vm584 = vcmp.lt.s32.totalorder %v547, 1
      %v585 = vsel %vm584, %v581, %v583
      %v586 = vsel %vm584, %v579, %v581
      %v587 = vsel %vm584, %v583, %v579
      %v588 = vsel %vm575, 1, 0
      %v589 = vsel %vm576, 1, 0
      %v590 = vsel %vm577, 1, 0
      %vm591 = vcmp.eq.s32.totalorder %v588, 1
      %vm592 = vcmp.eq.s32.totalorder %v589, 1
      %vm593 = vcmp.eq.s32.totalorder %v590, 1
      %v594 = vsel %vm591, %v587, 0.0
      %v595 = vsel %vm592, %v586, 0.0
      %v596 = vsel %vm593, %v585, 0.0
      %v597 = vld [vmem:[%s1 + $0xc0] sm:$0xff]
      %v598 = vld [vmem:[%s1 + $0x110] sm:$0xff]
      %600 = vset.pattern.permute.xlu0 0
      %601 = vperm.xlu0 %600, %v598
      %v602 = vpop.permute.xlu0 %601
      %v605 = vsel %vm169, %v597, 0
      %607 = vmatprep.subr.mxu0 0.0
      %608 = vmatpush1.msra.mxu0 0.0
      %609 = vmatprep.subr.mxu0 0.0
      %610 = vmatpush1.msra.mxu0 0.0
      %611 = vmatprep.subr.mxu0 0.0
      %612 = vmatpush1.msra.mxu0 0.0
      %613 = vmatprep.subr.mxu0 0.0
      %614 = vmatpush1.msra.mxu0 0.0
      %615 = vmatprep.subr.mxu0 0.0
      %616 = vmatpush1.msra.mxu0 0.0
      %617 = vmatprep.subr.mxu0 0.0
      %618 = vmatpush1.msra.mxu0 0.0
      %619 = vmatprep.subr.mxu0 0.0
      %620 = vmatpush1.msra.mxu0 0.0
      %621 = vmatprep.subr.mxu0 0.0
      %622 = vmatpush1.msra.mxu0 0.0
      %623 = vmatprep.subr.mxu0 0.0
      %624 = vmatpush1.msra.mxu0 0.0
      %625 = vmatprep.subr.mxu0 0.0
      %626 = vmatpush1.msra.mxu0 0.0
      %627 = vmatprep.subr.mxu0 0.0
      %628 = vmatpush1.msra.mxu0 0.0
      %629 = vmatprep.subr.mxu0 0.0
      %630 = vmatpush1.msra.mxu0 0.0
      %631 = vmatprep.subr.mxu0 0.0
      %632 = vmatpush1.msra.mxu0 0.0
      %633 = vmatprep.subr.mxu0 %v544
      %634 = vmatpush1.msra.mxu0 %v543
      %635 = vmatprep.subr.mxu0 %v595
      %636 = vmatpush1.msra.mxu0 %v594
      %637 = vmatprep.subr.mxu0 %v573
      %638 = vmatpush1.msra.mxu0 %v572
      %639 = vmatprep.subr.mxu0 0.0
      %640 = vmatpush2.msra.mxu0 0.0
      %641 = vmatprep.subr.mxu0 0.0
      %642 = vmatpush2.msra.mxu0 0.0
      %643 = vmatprep.subr.mxu0 0.0
      %644 = vmatpush2.msra.mxu0 0.0
      %645 = vmatprep.subr.mxu0 0.0
      %646 = vmatpush2.msra.mxu0 0.0
      %647 = vmatprep.subr.mxu0 0.0
      %648 = vmatpush2.msra.mxu0 0.0
      %649 = vmatprep.subr.mxu0 0.0
      %650 = vmatpush2.msra.mxu0 0.0
      %651 = vmatprep.subr.mxu0 0.0
      %652 = vmatpush2.msra.mxu0 0.0
      %653 = vmatprep.subr.mxu0 0.0
      %654 = vmatpush2.msra.mxu0 0.0
      %655 = vmatprep.subr.mxu0 0.0
      %656 = vmatpush2.msra.mxu0 0.0
      %657 = vmatprep.subr.mxu0 0.0
      %658 = vmatpush2.msra.mxu0 0.0
      %659 = vmatprep.subr.mxu0 0.0
      %660 = vmatpush2.msra.mxu0 0.0
      %661 = vmatprep.subr.mxu0 0.0
      %662 = vmatpush2.msra.mxu0 0.0
      %663 = vmatprep.subr.mxu0 0.0
      %664 = vmatpush2.msra.mxu0 0.0
      %665 = vmatprep.subr.mxu0 0.0
      %666 = vmatpush2.msra.mxu0 0.0
      %667 = vmatprep.subr.mxu0 0.0
      %668 = vmatpush2.msra.mxu0 0.0
      %669 = vmatprep.subr.mxu0 0.0
      %670 = vmatpush2.msra.mxu0 0.0
      %671 = vmatprep.mubr.f32.mxu0 0.0
      %672 = vmatmul.mubr.f32.gmra.mxu0 %v605
      %v673 = vpop.f32.mrf.mxu0
      %v674 = vadd.f32 %v602, %v673
      %v675 = vpop.f32.mrf.mxu0
      %v676 = vadd.f32 %v602, %v675
      %677 = vdwg.mxu0
      %678 = vmatprep.subr.mxu0 0.0
      %679 = vmatpush1.msra.mxu0 0.0
      %680 = vmatprep.subr.mxu0 0.0
      %681 = vmatpush1.msra.mxu0 0.0
      %682 = vmatprep.subr.mxu0 0.0
      %683 = vmatpush1.msra.mxu0 0.0
      %684 = vmatprep.subr.mxu0 0.0
      %685 = vmatpush1.msra.mxu0 0.0
      %686 = vmatprep.subr.mxu0 0.0
      %687 = vmatpush1.msra.mxu0 0.0
      %688 = vmatprep.subr.mxu0 0.0
      %689 = vmatpush1.msra.mxu0 0.0
      %690 = vmatprep.subr.mxu0 0.0
      %691 = vmatpush1.msra.mxu0 0.0
      %692 = vmatprep.subr.mxu0 0.0
      %693 = vmatpush1.msra.mxu0 0.0
      %694 = vmatprep.subr.mxu0 0.0
      %695 = vmatpush1.msra.mxu0 0.0
      %696 = vmatprep.subr.mxu0 0.0
      %697 = vmatpush1.msra.mxu0 0.0
      %698 = vmatprep.subr.mxu0 0.0
      %699 = vmatpush1.msra.mxu0 0.0
      %700 = vmatprep.subr.mxu0 0.0
      %701 = vmatpush1.msra.mxu0 0.0
      %702 = vmatprep.subr.mxu0 0.0
      %703 = vmatpush1.msra.mxu0 0.0
      %704 = vmatprep.subr.mxu0 0.0
      %705 = vmatpush1.msra.mxu0 %v545
      %706 = vmatprep.subr.mxu0 0.0
      %707 = vmatpush1.msra.mxu0 %v596
      %708 = vmatprep.subr.mxu0 0.0
      %709 = vmatpush1.msra.mxu0 %v574
      %710 = vmatprep.subr.mxu0 0.0
      %711 = vmatpush2.msra.mxu0 0.0
      %712 = vmatprep.subr.mxu0 0.0
      %713 = vmatpush2.msra.mxu0 0.0
      %714 = vmatprep.subr.mxu0 0.0
      %715 = vmatpush2.msra.mxu0 0.0
      %716 = vmatprep.subr.mxu0 0.0
      %717 = vmatpush2.msra.mxu0 0.0
      %718 = vmatprep.subr.mxu0 0.0
      %719 = vmatpush2.msra.mxu0 0.0
      %720 = vmatprep.subr.mxu0 0.0
      %721 = vmatpush2.msra.mxu0 0.0
      %722 = vmatprep.subr.mxu0 0.0
      %723 = vmatpush2.msra.mxu0 0.0
      %724 = vmatprep.subr.mxu0 0.0
      %725 = vmatpush2.msra.mxu0 0.0
      %726 = vmatprep.subr.mxu0 0.0
      %727 = vmatpush2.msra.mxu0 0.0
      %728 = vmatprep.subr.mxu0 0.0
      %729 = vmatpush2.msra.mxu0 0.0
      %730 = vmatprep.subr.mxu0 0.0
      %731 = vmatpush2.msra.mxu0 0.0
      %732 = vmatprep.subr.mxu0 0.0
      %733 = vmatpush2.msra.mxu0 0.0
      %734 = vmatprep.subr.mxu0 0.0
      %735 = vmatpush2.msra.mxu0 0.0
      %736 = vmatprep.subr.mxu0 0.0
      %737 = vmatpush2.msra.mxu0 0.0
      %738 = vmatprep.subr.mxu0 0.0
      %739 = vmatpush2.msra.mxu0 0.0
      %740 = vmatprep.subr.mxu0 0.0
      %741 = vmatpush2.msra.mxu0 0.0
      %742 = vmatprep.mubr.f32.mxu0 0.0
      %743 = vmatmul.mubr.f32.gmra.mxu0 %v605
      %v744 = vpop.f32.mrf.mxu0
      %v745 = vadd.f32 %v602, %v744
      %v746 = vpop.f32.mrf.mxu0
      %747 = vdwg.mxu0
      %v748 = vmax.f32 %v674, 0.0
      %v749 = vmax.f32 %v676, 0.0
      %v750 = vmax.f32 %v745, 0.0
      %751 = vrot.lane.b32.xlu0 %v748, 2
      %v752 = vpop.permute.xlu0 %751
      %753 = vrot.lane.b32.xlu0 %v749, 2
      %v754 = vpop.permute.xlu0 %753
      %755 = vrot.lane.b32.xlu0 %v750, 2
      %v756 = vpop.permute.xlu0 %755
      %v757 = vsel %vm562, %v754, %v756
      %v758 = vsel %vm562, %v752, %v754
      %v759 = vsel %vm562, %v756, %v752
      %v760 = vsel %vm569, %v759, 0.0
      %v761 = vsel %vm570, %v758, 0.0
      %v762 = vsel %vm571, %v757, 0.0
      %763 = vrot.lane.b32.xlu0 %v748, 1
      %v764 = vpop.permute.xlu0 %763
      %765 = vrot.lane.b32.xlu0 %v749, 1
      %v766 = vpop.permute.xlu0 %765
      %767 = vrot.lane.b32.xlu0 %v750, 1
      %v768 = vpop.permute.xlu0 %767
      %v769 = vsel %vm584, %v766, %v768
      %v770 = vsel %vm584, %v764, %v766
      %v771 = vsel %vm584, %v768, %v764
      %v772 = vsel %vm591, %v771, 0.0
      %v773 = vsel %vm592, %v770, 0.0
      %v774 = vsel %vm593, %v769, 0.0
      %v775 = vld [vmem:[%s1 + $0xc8] sm:$0xff]
      %v776 = vld [vmem:[%s1 + $0x118] sm:$0xff]
      %778 = vset.pattern.permute.xlu0 0
      %779 = vperm.xlu0 %778, %v776
      %v780 = vpop.permute.xlu0 %779
      %v783 = vsel %vm169, %v775, 0
      %785 = vmatprep.subr.mxu0 0.0
      %786 = vmatpush1.msra.mxu0 0.0
      %787 = vmatprep.subr.mxu0 0.0
      %788 = vmatpush1.msra.mxu0 0.0
      %789 = vmatprep.subr.mxu0 0.0
      %790 = vmatpush1.msra.mxu0 0.0
      %791 = vmatprep.subr.mxu0 0.0
      %792 = vmatpush1.msra.mxu0 0.0
      %793 = vmatprep.subr.mxu0 0.0
      %794 = vmatpush1.msra.mxu0 0.0
      %795 = vmatprep.subr.mxu0 0.0
      %796 = vmatpush1.msra.mxu0 0.0
      %797 = vmatprep.subr.mxu0 0.0
      %798 = vmatpush1.msra.mxu0 0.0
      %799 = vmatprep.subr.mxu0 0.0
      %800 = vmatpush1.msra.mxu0 0.0
      %801 = vmatprep.subr.mxu0 0.0
      %802 = vmatpush1.msra.mxu0 0.0
      %803 = vmatprep.subr.mxu0 0.0
      %804 = vmatpush1.msra.mxu0 0.0
      %805 = vmatprep.subr.mxu0 0.0
      %806 = vmatpush1.msra.mxu0 0.0
      %807 = vmatprep.subr.mxu0 0.0
      %808 = vmatpush1.msra.mxu0 0.0
      %809 = vmatprep.subr.mxu0 0.0
      %810 = vmatpush1.msra.mxu0 0.0
      %811 = vmatprep.subr.mxu0 %v749
      %812 = vmatpush1.msra.mxu0 %v748
      %813 = vmatprep.subr.mxu0 %v773
      %814 = vmatpush1.msra.mxu0 %v772
      %815 = vmatprep.subr.mxu0 %v761
      %816 = vmatpush1.msra.mxu0 %v760
      %817 = vmatprep.subr.mxu0 0.0
      %818 = vmatpush2.msra.mxu0 0.0
      %819 = vmatprep.subr.mxu0 0.0
      %820 = vmatpush2.msra.mxu0 0.0
      %821 = vmatprep.subr.mxu0 0.0
      %822 = vmatpush2.msra.mxu0 0.0
      %823 = vmatprep.subr.mxu0 0.0
      %824 = vmatpush2.msra.mxu0 0.0
      %825 = vmatprep.subr.mxu0 0.0
      %826 = vmatpush2.msra.mxu0 0.0
      %827 = vmatprep.subr.mxu0 0.0
      %828 = vmatpush2.msra.mxu0 0.0
      %829 = vmatprep.subr.mxu0 0.0
      %830 = vmatpush2.msra.mxu0 0.0
      %831 = vmatprep.subr.mxu0 0.0
      %832 = vmatpush2.msra.mxu0 0.0
      %833 = vmatprep.subr.mxu0 0.0
      %834 = vmatpush2.msra.mxu0 0.0
      %835 = vmatprep.subr.mxu0 0.0
      %836 = vmatpush2.msra.mxu0 0.0
      %837 = vmatprep.subr.mxu0 0.0
      %838 = vmatpush2.msra.mxu0 0.0
      %839 = vmatprep.subr.mxu0 0.0
      %840 = vmatpush2.msra.mxu0 0.0
      %841 = vmatprep.subr.mxu0 0.0
      %842 = vmatpush2.msra.mxu0 0.0
      %843 = vmatprep.subr.mxu0 0.0
      %844 = vmatpush2.msra.mxu0 0.0
      %845 = vmatprep.subr.mxu0 0.0
      %846 = vmatpush2.msra.mxu0 0.0
      %847 = vmatprep.subr.mxu0 0.0
      %848 = vmatpush2.msra.mxu0 0.0
      %849 = vmatprep.mubr.f32.mxu0 0.0
      %850 = vmatmul.mubr.f32.gmra.mxu0 %v783
      %v851 = vpop.f32.mrf.mxu0
      %v852 = vadd.f32 %v780, %v851
      %v853 = vpop.f32.mrf.mxu0
      %v854 = vadd.f32 %v780, %v853
      %855 = vdwg.mxu0
      %856 = vmatprep.subr.mxu0 0.0
      %857 = vmatpush1.msra.mxu0 0.0
      %858 = vmatprep.subr.mxu0 0.0
      %859 = vmatpush1.msra.mxu0 0.0
      %860 = vmatprep.subr.mxu0 0.0
      %861 = vmatpush1.msra.mxu0 0.0
      %862 = vmatprep.subr.mxu0 0.0
      %863 = vmatpush1.msra.mxu0 0.0
      %864 = vmatprep.subr.mxu0 0.0
      %865 = vmatpush1.msra.mxu0 0.0
      %866 = vmatprep.subr.mxu0 0.0
      %867 = vmatpush1.msra.mxu0 0.0
      %868 = vmatprep.subr.mxu0 0.0
      %869 = vmatpush1.msra.mxu0 0.0
      %870 = vmatprep.subr.mxu0 0.0
      %871 = vmatpush1.msra.mxu0 0.0
      %872 = vmatprep.subr.mxu0 0.0
      %873 = vmatpush1.msra.mxu0 0.0
      %874 = vmatprep.subr.mxu0 0.0
      %875 = vmatpush1.msra.mxu0 0.0
      %876 = vmatprep.subr.mxu0 0.0
      %877 = vmatpush1.msra.mxu0 0.0
      %878 = vmatprep.subr.mxu0 0.0
      %879 = vmatpush1.msra.mxu0 0.0
      %880 = vmatprep.subr.mxu0 0.0
      %881 = vmatpush1.msra.mxu0 0.0
      %882 = vmatprep.subr.mxu0 0.0
      %883 = vmatpush1.msra.mxu0 %v750
      %884 = vmatprep.subr.mxu0 0.0
      %885 = vmatpush1.msra.mxu0 %v774
      %886 = vmatprep.subr.mxu0 0.0
      %887 = vmatpush1.msra.mxu0 %v762
      %888 = vmatprep.subr.mxu0 0.0
      %889 = vmatpush2.msra.mxu0 0.0
      %890 = vmatprep.subr.mxu0 0.0
      %891 = vmatpush2.msra.mxu0 0.0
      %892 = vmatprep.subr.mxu0 0.0
      %893 = vmatpush2.msra.mxu0 0.0
      %894 = vmatprep.subr.mxu0 0.0
      %895 = vmatpush2.msra.mxu0 0.0
      %896 = vmatprep.subr.mxu0 0.0
      %897 = vmatpush2.msra.mxu0 0.0
      %898 = vmatprep.subr.mxu0 0.0
      %899 = vmatpush2.msra.mxu0 0.0
      %900 = vmatprep.subr.mxu0 0.0
      %901 = vmatpush2.msra.mxu0 0.0
      %902 = vmatprep.subr.mxu0 0.0
      %903 = vmatpush2.msra.mxu0 0.0
      %904 = vmatprep.subr.mxu0 0.0
      %905 = vmatpush2.msra.mxu0 0.0
      %906 = vmatprep.subr.mxu0 0.0
      %907 = vmatpush2.msra.mxu0 0.0
      %908 = vmatprep.subr.mxu0 0.0
      %909 = vmatpush2.msra.mxu0 0.0
      %910 = vmatprep.subr.mxu0 0.0
      %911 = vmatpush2.msra.mxu0 0.0
      %912 = vmatprep.subr.mxu0 0.0
      %913 = vmatpush2.msra.mxu0 0.0
      %914 = vmatprep.subr.mxu0 0.0
      %915 = vmatpush2.msra.mxu0 0.0
      %916 = vmatprep.subr.mxu0 0.0
      %917 = vmatpush2.msra.mxu0 0.0
      %918 = vmatprep.subr.mxu0 0.0
      %919 = vmatpush2.msra.mxu0 0.0
      %920 = vmatprep.mubr.f32.mxu0 0.0
      %921 = vmatmul.mubr.f32.gmra.mxu0 %v783
      %v922 = vpop.f32.mrf.mxu0
      %v923 = vadd.f32 %v780, %v922
      %v924 = vpop.f32.mrf.mxu0
      %925 = vdwg.mxu0
      %v926 = vmax.f32 %v852, 0.0
      %v927 = vmax.f32 %v854, 0.0
      %v928 = vmax.f32 %v923, 0.0
      %v929 = vadd.f32 %v926, %v543
      %v930 = vadd.f32 %v927, %v544
      %v931 = vadd.f32 %v928, %v545
      %v932 = vmax.f32 %v929, 0.0
      %v933 = vmax.f32 %v930, 0.0
      %v934 = vmax.f32 %v931, 0.0
      %vm935 = vcmp.ge.s32.totalorder %v550, 4
      %vm936 = vcmp.ge.s32.totalorder %v551, 4
      %vm937 = vcmp.ge.s32.totalorder %v552, 4
      %938 = vrot.lane.b32.xlu0 %v932, 4
      %v939 = vpop.permute.xlu0 %938
      %940 = vrot.lane.b32.xlu0 %v933, 4
      %v941 = vpop.permute.xlu0 %940
      %942 = vrot.lane.b32.xlu0 %v934, 4
      %v943 = vpop.permute.xlu0 %942
      %vm944 = vcmp.lt.s32.totalorder %v547, 4
      %v945 = vsel %vm944, %v941, %v943
      %v946 = vsel %vm944, %v939, %v941
      %v947 = vsel %vm944, %v943, %v939
      %v948 = vsel %vm935, 1, 0
      %v949 = vsel %vm936, 1, 0
      %v950 = vsel %vm937, 1, 0
      %vm951 = vcmp.eq.s32.totalorder %v948, 1
      %vm952 = vcmp.eq.s32.totalorder %v949, 1
      %vm953 = vcmp.eq.s32.totalorder %v950, 1
      %v954 = vsel %vm951, %v947, 0.0
      %v955 = vsel %vm952, %v946, 0.0
      %v956 = vsel %vm953, %v945, 0.0
      %957 = vrot.lane.b32.xlu0 %v932, 2
      %v958 = vpop.permute.xlu0 %957
      %959 = vrot.lane.b32.xlu0 %v933, 2
      %v960 = vpop.permute.xlu0 %959
      %961 = vrot.lane.b32.xlu0 %v934, 2
      %v962 = vpop.permute.xlu0 %961
      %v963 = vsel %vm562, %v960, %v962
      %v964 = vsel %vm562, %v958, %v960
      %v965 = vsel %vm562, %v962, %v958
      %v966 = vsel %vm569, %v965, 0.0
      %v967 = vsel %vm570, %v964, 0.0
      %v968 = vsel %vm571, %v963, 0.0
      %v969 = vld [vmem:[%s1 + $0xd0] sm:$0xff]
      %v970 = vld [vmem:[%s1 + $0xd8] sm:$0xff]
      %v971 = vld [vmem:[%s1 + $0x120] sm:$0xff]
      %v972 = vld [vmem:[%s1 + $0x128] sm:$0xff]
      %974 = vset.pattern.permute.xlu0 0
      %975 = vperm.xlu0 %974, %v971
      %v976 = vpop.permute.xlu0 %975
      %979 = vset.pattern.permute.xlu0 0
      %980 = vperm.xlu0 %979, %v972
      %v981 = vpop.permute.xlu0 %980
      %v984 = vsel %vm169, %v969, 0
      %v987 = vsel %vm169, %v970, 0
      %989 = vmatprep.subr.mxu0 0.0
      %990 = vmatpush1.msra.mxu0 0.0
      %991 = vmatprep.subr.mxu0 0.0
      %992 = vmatpush1.msra.mxu0 0.0
      %993 = vmatprep.subr.mxu0 0.0
      %994 = vmatpush1.msra.mxu0 0.0
      %995 = vmatprep.subr.mxu0 0.0
      %996 = vmatpush1.msra.mxu0 0.0
      %997 = vmatprep.subr.mxu0 0.0
      %998 = vmatpush1.msra.mxu0 0.0
      %999 = vmatprep.subr.mxu0 0.0
      %1000 = vmatpush1.msra.mxu0 0.0
      %1001 = vmatprep.subr.mxu0 0.0
      %1002 = vmatpush1.msra.mxu0 0.0
      %1003 = vmatprep.subr.mxu0 0.0
      %1004 = vmatpush1.msra.mxu0 0.0
      %1005 = vmatprep.subr.mxu0 0.0
      %1006 = vmatpush1.msra.mxu0 0.0
      %1007 = vmatprep.subr.mxu0 0.0
      %1008 = vmatpush1.msra.mxu0 0.0
      %1009 = vmatprep.subr.mxu0 0.0
      %1010 = vmatpush1.msra.mxu0 0.0
      %1011 = vmatprep.subr.mxu0 0.0
      %1012 = vmatpush1.msra.mxu0 0.0
      %1013 = vmatprep.subr.mxu0 0.0
      %1014 = vmatpush1.msra.mxu0 0.0
      %1015 = vmatprep.subr.mxu0 %v933
      %1016 = vmatpush1.msra.mxu0 %v932
      %1017 = vmatprep.subr.mxu0 %v967
      %1018 = vmatpush1.msra.mxu0 %v966
      %1019 = vmatprep.subr.mxu0 %v955
      %1020 = vmatpush1.msra.mxu0 %v954
      %1021 = vmatprep.subr.mxu0 0.0
      %1022 = vmatpush2.msra.mxu0 0.0
      %1023 = vmatprep.subr.mxu0 0.0
      %1024 = vmatpush2.msra.mxu0 0.0
      %1025 = vmatprep.subr.mxu0 0.0
      %1026 = vmatpush2.msra.mxu0 0.0
      %1027 = vmatprep.subr.mxu0 0.0
      %1028 = vmatpush2.msra.mxu0 0.0
      %1029 = vmatprep.subr.mxu0 0.0
      %1030 = vmatpush2.msra.mxu0 0.0
      %1031 = vmatprep.subr.mxu0 0.0
      %1032 = vmatpush2.msra.mxu0 0.0
      %1033 = vmatprep.subr.mxu0 0.0
      %1034 = vmatpush2.msra.mxu0 0.0
      %1035 = vmatprep.subr.mxu0 0.0
      %1036 = vmatpush2.msra.mxu0 0.0
      %1037 = vmatprep.subr.mxu0 0.0
      %1038 = vmatpush2.msra.mxu0 0.0
      %1039 = vmatprep.subr.mxu0 0.0
      %1040 = vmatpush2.msra.mxu0 0.0
      %1041 = vmatprep.subr.mxu0 0.0
      %1042 = vmatpush2.msra.mxu0 0.0
      %1043 = vmatprep.subr.mxu0 0.0
      %1044 = vmatpush2.msra.mxu0 0.0
      %1045 = vmatprep.subr.mxu0 0.0
      %1046 = vmatpush2.msra.mxu0 0.0
      %1047 = vmatprep.subr.mxu0 0.0
      %1048 = vmatpush2.msra.mxu0 0.0
      %1049 = vmatprep.subr.mxu0 0.0
      %1050 = vmatpush2.msra.mxu0 0.0
      %1051 = vmatprep.subr.mxu0 0.0
      %1052 = vmatpush2.msra.mxu0 0.0
      %1053 = vmatprep.mubr.f32.mxu0 0.0
      %1054 = vmatmul.mubr.f32.gmra.mxu0 %v984
      %v1055 = vpop.f32.mrf.mxu0
      %v1056 = vadd.f32 %v976, %v1055
      %v1057 = vpop.f32.mrf.mxu0
      %v1058 = vadd.f32 %v976, %v1057
      %1059 = vmatprep.mubr.f32.mxu0 0.0
      %1060 = vmatmul.mubr.f32.gmra.mxu0 %v987
      %v1061 = vpop.f32.mrf.mxu0
      %v1062 = vadd.f32 %v981, %v1061
      %v1063 = vpop.f32.mrf.mxu0
      %v1064 = vadd.f32 %v981, %v1063
      %1065 = vdwg.mxu0
      %1066 = vmatprep.subr.mxu0 0.0
      %1067 = vmatpush1.msra.mxu0 0.0
      %1068 = vmatprep.subr.mxu0 0.0
      %1069 = vmatpush1.msra.mxu0 0.0
      %1070 = vmatprep.subr.mxu0 0.0
      %1071 = vmatpush1.msra.mxu0 0.0
      %1072 = vmatprep.subr.mxu0 0.0
      %1073 = vmatpush1.msra.mxu0 0.0
      %1074 = vmatprep.subr.mxu0 0.0
      %1075 = vmatpush1.msra.mxu0 0.0
      %1076 = vmatprep.subr.mxu0 0.0
      %1077 = vmatpush1.msra.mxu0 0.0
      %1078 = vmatprep.subr.mxu0 0.0
      %1079 = vmatpush1.msra.mxu0 0.0
      %1080 = vmatprep.subr.mxu0 0.0
      %1081 = vmatpush1.msra.mxu0 0.0
      %1082 = vmatprep.subr.mxu0 0.0
      %1083 = vmatpush1.msra.mxu0 0.0
      %1084 = vmatprep.subr.mxu0 0.0
      %1085 = vmatpush1.msra.mxu0 0.0
      %1086 = vmatprep.subr.mxu0 0.0
      %1087 = vmatpush1.msra.mxu0 0.0
      %1088 = vmatprep.subr.mxu0 0.0
      %1089 = vmatpush1.msra.mxu0 0.0
      %1090 = vmatprep.subr.mxu0 0.0
      %1091 = vmatpush1.msra.mxu0 0.0
      %1092 = vmatprep.subr.mxu0 0.0
      %1093 = vmatpush1.msra.mxu0 %v934
      %1094 = vmatprep.subr.mxu0 0.0
      %1095 = vmatpush1.msra.mxu0 %v968
      %1096 = vmatprep.subr.mxu0 0.0
      %1097 = vmatpush1.msra.mxu0 %v956
      %1098 = vmatprep.subr.mxu0 0.0
      %1099 = vmatpush2.msra.mxu0 0.0
      %1100 = vmatprep.subr.mxu0 0.0
      %1101 = vmatpush2.msra.mxu0 0.0
      %1102 = vmatprep.subr.mxu0 0.0
      %1103 = vmatpush2.msra.mxu0 0.0
      %1104 = vmatprep.subr.mxu0 0.0
      %1105 = vmatpush2.msra.mxu0 0.0
      %1106 = vmatprep.subr.mxu0 0.0
      %1107 = vmatpush2.msra.mxu0 0.0
      %1108 = vmatprep.subr.mxu0 0.0
      %1109 = vmatpush2.msra.mxu0 0.0
      %1110 = vmatprep.subr.mxu0 0.0
      %1111 = vmatpush2.msra.mxu0 0.0
      %1112 = vmatprep.subr.mxu0 0.0
      %1113 = vmatpush2.msra.mxu0 0.0
      %1114 = vmatprep.subr.mxu0 0.0
      %1115 = vmatpush2.msra.mxu0 0.0
      %1116 = vmatprep.subr.mxu0 0.0
      %1117 = vmatpush2.msra.mxu0 0.0
      %1118 = vmatprep.subr.mxu0 0.0
      %1119 = vmatpush2.msra.mxu0 0.0
      %1120 = vmatprep.subr.mxu0 0.0
      %1121 = vmatpush2.msra.mxu0 0.0
      %1122 = vmatprep.subr.mxu0 0.0
      %1123 = vmatpush2.msra.mxu0 0.0
      %1124 = vmatprep.subr.mxu0 0.0
      %1125 = vmatpush2.msra.mxu0 0.0
      %1126 = vmatprep.subr.mxu0 0.0
      %1127 = vmatpush2.msra.mxu0 0.0
      %1128 = vmatprep.subr.mxu0 0.0
      %1129 = vmatpush2.msra.mxu0 0.0
      %1130 = vmatprep.mubr.f32.mxu0 0.0
      %1131 = vmatmul.mubr.f32.gmra.mxu0 %v984
      %v1132 = vpop.f32.mrf.mxu0
      %v1133 = vadd.f32 %v976, %v1132
      %v1134 = vpop.f32.mrf.mxu0
      %1135 = vmatprep.mubr.f32.mxu0 0.0
      %1136 = vmatmul.mubr.f32.gmra.mxu0 %v987
      %v1137 = vpop.f32.mrf.mxu0
      %v1138 = vadd.f32 %v981, %v1137
      %v1139 = vpop.f32.mrf.mxu0
      %1140 = vdwg.mxu0
      %v1141 = vmax.f32 %v1056, 0.0
      %v1142 = vmax.f32 %v1058, 0.0
      %v1143 = vmax.f32 %v1133, 0.0
      %v1144 = vmax.f32 %v1062, 0.0
      %v1145 = vmax.f32 %v1064, 0.0
      %v1146 = vmax.f32 %v1138, 0.0
      %1147 = vrot.lane.b32.xlu0 %v1141, 4
      %v1148 = vpop.permute.xlu0 %1147
      %1149 = vrot.lane.b32.xlu0 %v1144, 4
      %v1150 = vpop.permute.xlu0 %1149
      %1151 = vrot.lane.b32.xlu0 %v1142, 4
      %v1152 = vpop.permute.xlu0 %1151
      %1153 = vrot.lane.b32.xlu0 %v1145, 4
      %v1154 = vpop.permute.xlu0 %1153
      %1155 = vrot.lane.b32.xlu0 %v1143, 4
      %v1156 = vpop.permute.xlu0 %1155
      %1157 = vrot.lane.b32.xlu0 %v1146, 4
      %v1158 = vpop.permute.xlu0 %1157
      %v1159 = vsel %vm944, %v1152, %v1156
      %v1160 = vsel %vm944, %v1154, %v1158
      %v1161 = vsel %vm944, %v1148, %v1152
      %v1162 = vsel %vm944, %v1150, %v1154
      %v1163 = vsel %vm944, %v1156, %v1148
      %v1164 = vsel %vm944, %v1158, %v1150
      %v1165 = vsel %vm951, %v1163, 0.0
      %v1166 = vsel %vm952, %v1161, 0.0
      %v1167 = vsel %vm953, %v1159, 0.0
      %v1168 = vsel %vm951, %v1164, 0.0
      %v1169 = vsel %vm952, %v1162, 0.0
      %v1170 = vsel %vm953, %v1160, 0.0
      %1171 = vrot.lane.b32.xlu0 %v1141, 2
      %v1172 = vpop.permute.xlu0 %1171
      %1173 = vrot.lane.b32.xlu0 %v1144, 2
      %v1174 = vpop.permute.xlu0 %1173
      %1175 = vrot.lane.b32.xlu0 %v1142, 2
      %v1176 = vpop.permute.xlu0 %1175
      %1177 = vrot.lane.b32.xlu0 %v1145, 2
      %v1178 = vpop.permute.xlu0 %1177
      %1179 = vrot.lane.b32.xlu0 %v1143, 2
      %v1180 = vpop.permute.xlu0 %1179
      %1181 = vrot.lane.b32.xlu0 %v1146, 2
      %v1182 = vpop.permute.xlu0 %1181
      %v1183 = vsel %vm562, %v1176, %v1180
      %v1184 = vsel %vm562, %v1178, %v1182
      %v1185 = vsel %vm562, %v1172, %v1176
      %v1186 = vsel %vm562, %v1174, %v1178
      %v1187 = vsel %vm562, %v1180, %v1172
      %v1188 = vsel %vm562, %v1182, %v1174
      %v1189 = vsel %vm569, %v1187, 0.0
      %v1190 = vsel %vm570, %v1185, 0.0
      %v1191 = vsel %vm571, %v1183, 0.0
      %v1192 = vsel %vm569, %v1188, 0.0
      %v1193 = vsel %vm570, %v1186, 0.0
      %v1194 = vsel %vm571, %v1184, 0.0
      %v1195 = vld [vmem:[%s1 + $0xe0] sm:$0xff]
      %v1196 = vld [vmem:[%s1 + $0xe8] sm:$0xff]
      %v1197 = vld [vmem:[%s1 + $0x130] sm:$0xff]
      %v1198 = vld [vmem:[%s1 + $0x138] sm:$0xff]
      %1200 = vset.pattern.permute.xlu0 0
      %1201 = vperm.xlu0 %1200, %v1197
      %v1202 = vpop.permute.xlu0 %1201
      %1205 = vset.pattern.permute.xlu0 0
      %1206 = vperm.xlu0 %1205, %v1198
      %v1207 = vpop.permute.xlu0 %1206
      %vm1209 = vcmask 392192
      %v1211 = vsel %vm1209, %v1195, 0
      %v1214 = vsel %vm1209, %v1196, 0
      %1216 = vmatprep.subr.mxu0 0.0
      %1217 = vmatpush1.msra.mxu0 0.0
      %1218 = vmatprep.subr.mxu0 0.0
      %1219 = vmatpush1.msra.mxu0 0.0
      %1220 = vmatprep.subr.mxu0 0.0
      %1221 = vmatpush1.msra.mxu0 0.0
      %1222 = vmatprep.subr.mxu0 0.0
      %1223 = vmatpush1.msra.mxu0 0.0
      %1224 = vmatprep.subr.mxu0 0.0
      %1225 = vmatpush1.msra.mxu0 0.0
      %1226 = vmatprep.subr.mxu0 0.0
      %1227 = vmatpush1.msra.mxu0 0.0
      %1228 = vmatprep.subr.mxu0 0.0
      %1229 = vmatpush1.msra.mxu0 0.0
      %1230 = vmatprep.subr.mxu0 0.0
      %1231 = vmatpush1.msra.mxu0 0.0
      %1232 = vmatprep.subr.mxu0 0.0
      %1233 = vmatpush1.msra.mxu0 0.0
      %1234 = vmatprep.subr.mxu0 0.0
      %1235 = vmatpush1.msra.mxu0 0.0
      %1236 = vmatprep.subr.mxu0 %v1145
      %1237 = vmatpush1.msra.mxu0 %v1144
      %1238 = vmatprep.subr.mxu0 %v1142
      %1239 = vmatpush1.msra.mxu0 %v1141
      %1240 = vmatprep.subr.mxu0 %v1193
      %1241 = vmatpush1.msra.mxu0 %v1192
      %1242 = vmatprep.subr.mxu0 %v1190
      %1243 = vmatpush1.msra.mxu0 %v1189
      %1244 = vmatprep.subr.mxu0 %v1169
      %1245 = vmatpush1.msra.mxu0 %v1168
      %1246 = vmatprep.subr.mxu0 %v1166
      %1247 = vmatpush1.msra.mxu0 %v1165
      %1248 = vmatprep.subr.mxu0 0.0
      %1249 = vmatpush2.msra.mxu0 0.0
      %1250 = vmatprep.subr.mxu0 0.0
      %1251 = vmatpush2.msra.mxu0 0.0
      %1252 = vmatprep.subr.mxu0 0.0
      %1253 = vmatpush2.msra.mxu0 0.0
      %1254 = vmatprep.subr.mxu0 0.0
      %1255 = vmatpush2.msra.mxu0 0.0
      %1256 = vmatprep.subr.mxu0 0.0
      %1257 = vmatpush2.msra.mxu0 0.0
      %1258 = vmatprep.subr.mxu0 0.0
      %1259 = vmatpush2.msra.mxu0 0.0
      %1260 = vmatprep.subr.mxu0 0.0
      %1261 = vmatpush2.msra.mxu0 0.0
      %1262 = vmatprep.subr.mxu0 0.0
      %1263 = vmatpush2.msra.mxu0 0.0
      %1264 = vmatprep.subr.mxu0 0.0
      %1265 = vmatpush2.msra.mxu0 0.0
      %1266 = vmatprep.subr.mxu0 0.0
      %1267 = vmatpush2.msra.mxu0 0.0
      %1268 = vmatprep.subr.mxu0 0.0
      %1269 = vmatpush2.msra.mxu0 0.0
      %1270 = vmatprep.subr.mxu0 0.0
      %1271 = vmatpush2.msra.mxu0 0.0
      %1272 = vmatprep.subr.mxu0 0.0
      %1273 = vmatpush2.msra.mxu0 0.0
      %1274 = vmatprep.subr.mxu0 0.0
      %1275 = vmatpush2.msra.mxu0 0.0
      %1276 = vmatprep.subr.mxu0 0.0
      %1277 = vmatpush2.msra.mxu0 0.0
      %1278 = vmatprep.subr.mxu0 0.0
      %1279 = vmatpush2.msra.mxu0 0.0
      %1280 = vmatprep.mubr.f32.mxu0 0.0
      %1281 = vmatmul.mubr.f32.gmra.mxu0 %v1211
      %v1282 = vpop.f32.mrf.mxu0
      %v1283 = vadd.f32 %v1202, %v1282
      %v1284 = vpop.f32.mrf.mxu0
      %v1285 = vadd.f32 %v1202, %v1284
      %1286 = vmatprep.mubr.f32.mxu0 0.0
      %1287 = vmatmul.mubr.f32.gmra.mxu0 %v1214
      %v1288 = vpop.f32.mrf.mxu0
      %v1289 = vadd.f32 %v1207, %v1288
      %v1290 = vpop.f32.mrf.mxu0
      %v1291 = vadd.f32 %v1207, %v1290
      %1292 = vdwg.mxu0
      %1293 = vmatprep.subr.mxu0 0.0
      %1294 = vmatpush1.msra.mxu0 0.0
      %1295 = vmatprep.subr.mxu0 0.0
      %1296 = vmatpush1.msra.mxu0 0.0
      %1297 = vmatprep.subr.mxu0 0.0
      %1298 = vmatpush1.msra.mxu0 0.0
      %1299 = vmatprep.subr.mxu0 0.0
      %1300 = vmatpush1.msra.mxu0 0.0
      %1301 = vmatprep.subr.mxu0 0.0
      %1302 = vmatpush1.msra.mxu0 0.0
      %1303 = vmatprep.subr.mxu0 0.0
      %1304 = vmatpush1.msra.mxu0 0.0
      %1305 = vmatprep.subr.mxu0 0.0
      %1306 = vmatpush1.msra.mxu0 0.0
      %1307 = vmatprep.subr.mxu0 0.0
      %1308 = vmatpush1.msra.mxu0 0.0
      %1309 = vmatprep.subr.mxu0 0.0
      %1310 = vmatpush1.msra.mxu0 0.0
      %1311 = vmatprep.subr.mxu0 0.0
      %1312 = vmatpush1.msra.mxu0 0.0
      %1313 = vmatprep.subr.mxu0 0.0
      %1314 = vmatpush1.msra.mxu0 %v1146
      %1315 = vmatprep.subr.mxu0 0.0
      %1316 = vmatpush1.msra.mxu0 %v1143
      %1317 = vmatprep.subr.mxu0 0.0
      %1318 = vmatpush1.msra.mxu0 %v1194
      %1319 = vmatprep.subr.mxu0 0.0
      %1320 = vmatpush1.msra.mxu0 %v1191
      %1321 = vmatprep.subr.mxu0 0.0
      %1322 = vmatpush1.msra.mxu0 %v1170
      %1323 = vmatprep.subr.mxu0 0.0
      %1324 = vmatpush1.msra.mxu0 %v1167
      %1325 = vmatprep.subr.mxu0 0.0
      %1326 = vmatpush2.msra.mxu0 0.0
      %1327 = vmatprep.subr.mxu0 0.0
      %1328 = vmatpush2.msra.mxu0 0.0
      %1329 = vmatprep.subr.mxu0 0.0
      %1330 = vmatpush2.msra.mxu0 0.0
      %1331 = vmatprep.subr.mxu0 0.0
      %1332 = vmatpush2.msra.mxu0 0.0
      %1333 = vmatprep.subr.mxu0 0.0
      %1334 = vmatpush2.msra.mxu0 0.0
      %1335 = vmatprep.subr.mxu0 0.0
      %1336 = vmatpush2.msra.mxu0 0.0
      %1337 = vmatprep.subr.mxu0 0.0
      %1338 = vmatpush2.msra.mxu0 0.0
      %1339 = vmatprep.subr.mxu0 0.0
      %1340 = vmatpush2.msra.mxu0 0.0
      %1341 = vmatprep.subr.mxu0 0.0
      %1342 = vmatpush2.msra.mxu0 0.0
      %1343 = vmatprep.subr.mxu0 0.0
      %1344 = vmatpush2.msra.mxu0 0.0
      %1345 = vmatprep.subr.mxu0 0.0
      %1346 = vmatpush2.msra.mxu0 0.0
      %1347 = vmatprep.subr.mxu0 0.0
      %1348 = vmatpush2.msra.mxu0 0.0
      %1349 = vmatprep.subr.mxu0 0.0
      %1350 = vmatpush2.msra.mxu0 0.0
      %1351 = vmatprep.subr.mxu0 0.0
      %1352 = vmatpush2.msra.mxu0 0.0
      %1353 = vmatprep.subr.mxu0 0.0
      %1354 = vmatpush2.msra.mxu0 0.0
      %1355 = vmatprep.subr.mxu0 0.0
      %1356 = vmatpush2.msra.mxu0 0.0
      %1357 = vmatprep.mubr.f32.mxu0 0.0
      %1358 = vmatmul.mubr.f32.gmra.mxu0 %v1211
      %v1359 = vpop.f32.mrf.mxu0
      %v1360 = vadd.f32 %v1202, %v1359
      %v1361 = vpop.f32.mrf.mxu0
      %1362 = vmatprep.mubr.f32.mxu0 0.0
      %1363 = vmatmul.mubr.f32.gmra.mxu0 %v1214
      %v1364 = vpop.f32.mrf.mxu0
      %v1365 = vadd.f32 %v1207, %v1364
      %v1366 = vpop.f32.mrf.mxu0
      %1367 = vdwg.mxu0
      %v1368 = vmax.f32 %v1283, 0.0
      %v1369 = vmax.f32 %v1285, 0.0
      %v1370 = vmax.f32 %v1360, 0.0
      %v1371 = vmax.f32 %v1289, 0.0
      %v1372 = vmax.f32 %v1291, 0.0
      %v1373 = vmax.f32 %v1365, 0.0
      %v1374 = vld [vmem:[%s1 + $0xf0] sm:$0xff]
      %v1375 = vld [vmem:[%s1 + $0xf8] sm:$0xff]
      %vm1376 = vcmask 64512
      %v1378 = vsel %vm1376, %v1374, 0
      %v1381 = vsel %vm1376, %v1375, 0
      %1383 = vmatprep.subr.mxu0 0.0
      %1384 = vmatpush1.msra.mxu0 0.0
      %1385 = vmatprep.subr.mxu0 0.0
      %1386 = vmatpush1.msra.mxu0 0.0
      %1387 = vmatprep.subr.mxu0 0.0
      %1388 = vmatpush1.msra.mxu0 0.0
      %1389 = vmatprep.subr.mxu0 0.0
      %1390 = vmatpush1.msra.mxu0 0.0
      %1391 = vmatprep.subr.mxu0 0.0
      %1392 = vmatpush1.msra.mxu0 0.0
      %1393 = vmatprep.subr.mxu0 0.0
      %1394 = vmatpush1.msra.mxu0 0.0
      %1395 = vmatprep.subr.mxu0 0.0
      %1396 = vmatpush1.msra.mxu0 0.0
      %1397 = vmatprep.subr.mxu0 0.0
      %1398 = vmatpush1.msra.mxu0 0.0
      %1399 = vmatprep.subr.mxu0 0.0
      %1400 = vmatpush1.msra.mxu0 0.0
      %1401 = vmatprep.subr.mxu0 0.0
      %1402 = vmatpush1.msra.mxu0 0.0
      %1403 = vmatprep.subr.mxu0 0.0
      %1404 = vmatpush1.msra.mxu0 0.0
      %1405 = vmatprep.subr.mxu0 0.0
      %1406 = vmatpush1.msra.mxu0 0.0
      %1407 = vmatprep.subr.mxu0 0.0
      %1408 = vmatpush1.msra.mxu0 0.0
      %1409 = vmatprep.subr.mxu0 0.0
      %1410 = vmatpush1.msra.mxu0 0.0
      %1411 = vmatprep.subr.mxu0 0.0
      %1412 = vmatpush1.msra.mxu0 0.0
      %1413 = vmatprep.subr.mxu0 %v933
      %1414 = vmatpush1.msra.mxu0 %v932
      %1415 = vmatprep.subr.mxu0 0.0
      %1416 = vmatpush2.msra.mxu0 0.0
      %1417 = vmatprep.subr.mxu0 0.0
      %1418 = vmatpush2.msra.mxu0 0.0
      %1419 = vmatprep.subr.mxu0 0.0
      %1420 = vmatpush2.msra.mxu0 0.0
      %1421 = vmatprep.subr.mxu0 0.0
      %1422 = vmatpush2.msra.mxu0 0.0
      %1423 = vmatprep.subr.mxu0 0.0
      %1424 = vmatpush2.msra.mxu0 0.0
      %1425 = vmatprep.subr.mxu0 0.0
      %1426 = vmatpush2.msra.mxu0 0.0
      %1427 = vmatprep.subr.mxu0 0.0
      %1428 = vmatpush2.msra.mxu0 0.0
      %1429 = vmatprep.subr.mxu0 0.0
      %1430 = vmatpush2.msra.mxu0 0.0
      %1431 = vmatprep.subr.mxu0 0.0
      %1432 = vmatpush2.msra.mxu0 0.0
      %1433 = vmatprep.subr.mxu0 0.0
      %1434 = vmatpush2.msra.mxu0 0.0
      %1435 = vmatprep.subr.mxu0 0.0
      %1436 = vmatpush2.msra.mxu0 0.0
      %1437 = vmatprep.subr.mxu0 0.0
      %1438 = vmatpush2.msra.mxu0 0.0
      %1439 = vmatprep.subr.mxu0 0.0
      %1440 = vmatpush2.msra.mxu0 0.0
      %1441 = vmatprep.subr.mxu0 0.0
      %1442 = vmatpush2.msra.mxu0 0.0
      %1443 = vmatprep.subr.mxu0 0.0
      %1444 = vmatpush2.msra.mxu0 0.0
      %1445 = vmatprep.subr.mxu0 0.0
      %1446 = vmatpush2.msra.mxu0 0.0
      %1447 = vmatprep.mubr.f32.mxu0 0.0
      %1448 = vmatmul.mubr.f32.gmra.mxu0 %v1378
      %v1449 = vpop.f32.mrf.mxu0
      %v1450 = vadd.f32 0.0, %v1449
      %v1451 = vpop.f32.mrf.mxu0
      %v1452 = vadd.f32 0.0, %v1451
      %1453 = vmatprep.mubr.f32.mxu0 0.0
      %1454 = vmatmul.mubr.f32.gmra.mxu0 %v1381
      %v1455 = vpop.f32.mrf.mxu0
      %v1456 = vadd.f32 0.0, %v1455
      %v1457 = vpop.f32.mrf.mxu0
      %v1458 = vadd.f32 0.0, %v1457
      %1459 = vdwg.mxu0
      %1460 = vmatprep.subr.mxu0 0.0
      %1461 = vmatpush1.msra.mxu0 0.0
      %1462 = vmatprep.subr.mxu0 0.0
      %1463 = vmatpush1.msra.mxu0 0.0
      %1464 = vmatprep.subr.mxu0 0.0
      %1465 = vmatpush1.msra.mxu0 0.0
      %1466 = vmatprep.subr.mxu0 0.0
      %1467 = vmatpush1.msra.mxu0 0.0
      %1468 = vmatprep.subr.mxu0 0.0
      %1469 = vmatpush1.msra.mxu0 0.0
      %1470 = vmatprep.subr.mxu0 0.0
      %1471 = vmatpush1.msra.mxu0 0.0
      %1472 = vmatprep.subr.mxu0 0.0
      %1473 = vmatpush1.msra.mxu0 0.0
      %1474 = vmatprep.subr.mxu0 0.0
      %1475 = vmatpush1.msra.mxu0 0.0
      %1476 = vmatprep.subr.mxu0 0.0
      %1477 = vmatpush1.msra.mxu0 0.0
      %1478 = vmatprep.subr.mxu0 0.0
      %1479 = vmatpush1.msra.mxu0 0.0
      %1480 = vmatprep.subr.mxu0 0.0
      %1481 = vmatpush1.msra.mxu0 0.0
      %1482 = vmatprep.subr.mxu0 0.0
      %1483 = vmatpush1.msra.mxu0 0.0
      %1484 = vmatprep.subr.mxu0 0.0
      %1485 = vmatpush1.msra.mxu0 0.0
      %1486 = vmatprep.subr.mxu0 0.0
      %1487 = vmatpush1.msra.mxu0 0.0
      %1488 = vmatprep.subr.mxu0 0.0
      %1489 = vmatpush1.msra.mxu0 0.0
      %1490 = vmatprep.subr.mxu0 0.0
      %1491 = vmatpush1.msra.mxu0 %v934
      %1492 = vmatprep.subr.mxu0 0.0
      %1493 = vmatpush2.msra.mxu0 0.0
      %1494 = vmatprep.subr.mxu0 0.0
      %1495 = vmatpush2.msra.mxu0 0.0
      %1496 = vmatprep.subr.mxu0 0.0
      %1497 = vmatpush2.msra.mxu0 0.0
      %1498 = vmatprep.subr.mxu0 0.0
      %1499 = vmatpush2.msra.mxu0 0.0
      %1500 = vmatprep.subr.mxu0 0.0
      %1501 = vmatpush2.msra.mxu0 0.0
      %1502 = vmatprep.subr.mxu0 0.0
      %1503 = vmatpush2.msra.mxu0 0.0
      %1504 = vmatprep.subr.mxu0 0.0
      %1505 = vmatpush2.msra.mxu0 0.0
      %1506 = vmatprep.subr.mxu0 0.0
      %1507 = vmatpush2.msra.mxu0 0.0
      %1508 = vmatprep.subr.mxu0 0.0
      %1509 = vmatpush2.msra.mxu0 0.0
      %1510 = vmatprep.subr.mxu0 0.0
      %1511 = vmatpush2.msra.mxu0 0.0
      %1512 = vmatprep.subr.mxu0 0.0
      %1513 = vmatpush2.msra.mxu0 0.0
      %1514 = vmatprep.subr.mxu0 0.0
      %1515 = vmatpush2.msra.mxu0 0.0
      %1516 = vmatprep.subr.mxu0 0.0
      %1517 = vmatpush2.msra.mxu0 0.0
      %1518 = vmatprep.subr.mxu0 0.0
      %1519 = vmatpush2.msra.mxu0 0.0
      %1520 = vmatprep.subr.mxu0 0.0
      %1521 = vmatpush2.msra.mxu0 0.0
      %1522 = vmatprep.subr.mxu0 0.0
      %1523 = vmatpush2.msra.mxu0 0.0
      %1524 = vmatprep.mubr.f32.mxu0 0.0
      %1525 = vmatmul.mubr.f32.gmra.mxu0 %v1378
      %v1526 = vpop.f32.mrf.mxu0
      %v1527 = vadd.f32 0.0, %v1526
      %v1528 = vpop.f32.mrf.mxu0
      %1529 = vmatprep.mubr.f32.mxu0 0.0
      %1530 = vmatmul.mubr.f32.gmra.mxu0 %v1381
      %v1531 = vpop.f32.mrf.mxu0
      %v1532 = vadd.f32 0.0, %v1531
      %v1533 = vpop.f32.mrf.mxu0
      %1534 = vdwg.mxu0
      %v1535 = vadd.f32 %v1368, %v1450
      %v1536 = vadd.f32 %v1369, %v1452
      %v1537 = vadd.f32 %v1370, %v1527
      %v1538 = vadd.f32 %v1371, %v1456
      %v1539 = vadd.f32 %v1372, %v1458
      %v1540 = vadd.f32 %v1373, %v1532
      %v1541 = vld [vmem:[%s1 + $0x140] sm:$0xff]
      %v1542 = vld [vmem:[%s1 + $0x148] sm:$0xff]
      %1544 = vset.pattern.permute.xlu0 0
      %1545 = vperm.xlu0 %1544, %v1541
      %v1546 = vpop.permute.xlu0 %1545
      %1549 = vset.pattern.permute.xlu0 0
      %1550 = vperm.xlu0 %1549, %v1542
      %v1551 = vpop.permute.xlu0 %1550
      %v1553 = vadd.f32 %v1535, %v1546
      %v1554 = vadd.f32 %v1536, %v1546
      %v1555 = vadd.f32 %v1537, %v1546
      %v1556 = vadd.f32 %v1538, %v1551
      %v1557 = vadd.f32 %v1539, %v1551
      %v1558 = vadd.f32 %v1540, %v1551
      %v1559 = vld [vmem:[%s1 + $0x100] sm:$0xff]
      %v1560 = vld [vmem:[%s1 + $0x150] sm:$0xff]
      %1562 = vset.pattern.permute.xlu0 0
      %1563 = vperm.xlu0 %1562, %v1560
      %v1564 = vpop.permute.xlu0 %1563
      %v1567 = vsel %vm427, %v1559, 0
      %1569 = vmatprep.subr.mxu0 0.0
      %1570 = vmatpush1.msra.mxu0 0.0
      %1571 = vmatprep.subr.mxu0 0.0
      %1572 = vmatpush1.msra.mxu0 0.0
      %1573 = vmatprep.subr.mxu0 0.0
      %1574 = vmatpush1.msra.mxu0 0.0
      %1575 = vmatprep.subr.mxu0 0.0
      %1576 = vmatpush1.msra.mxu0 0.0
      %1577 = vmatprep.subr.mxu0 0.0
      %1578 = vmatpush1.msra.mxu0 0.0
      %1579 = vmatprep.subr.mxu0 0.0
      %1580 = vmatpush1.msra.mxu0 0.0
      %1581 = vmatprep.subr.mxu0 0.0
      %1582 = vmatpush1.msra.mxu0 0.0
      %1583 = vmatprep.subr.mxu0 0.0
      %1584 = vmatpush1.msra.mxu0 0.0
      %1585 = vmatprep.subr.mxu0 0.0
      %1586 = vmatpush1.msra.mxu0 0.0
      %1587 = vmatprep.subr.mxu0 0.0
      %1588 = vmatpush1.msra.mxu0 0.0
      %1589 = vmatprep.subr.mxu0 0.0
      %1590 = vmatpush1.msra.mxu0 0.0
      %1591 = vmatprep.subr.mxu0 0.0
      %1592 = vmatpush1.msra.mxu0 0.0
      %1593 = vmatprep.subr.mxu0 0.0
      %1594 = vmatpush1.msra.mxu0 0.0
      %1595 = vmatprep.subr.mxu0 0.0
      %1596 = vmatpush1.msra.mxu0 0.0
      %1597 = vmatprep.subr.mxu0 %v1557
      %1598 = vmatpush1.msra.mxu0 %v1556
      %1599 = vmatprep.subr.mxu0 %v1554
      %1600 = vmatpush1.msra.mxu0 %v1553
      %1601 = vmatprep.subr.mxu0 0.0
      %1602 = vmatpush2.msra.mxu0 0.0
      %1603 = vmatprep.subr.mxu0 0.0
      %1604 = vmatpush2.msra.mxu0 0.0
      %1605 = vmatprep.subr.mxu0 0.0
      %1606 = vmatpush2.msra.mxu0 0.0
      %1607 = vmatprep.subr.mxu0 0.0
      %1608 = vmatpush2.msra.mxu0 0.0
      %1609 = vmatprep.subr.mxu0 0.0
      %1610 = vmatpush2.msra.mxu0 0.0
      %1611 = vmatprep.subr.mxu0 0.0
      %1612 = vmatpush2.msra.mxu0 0.0
      %1613 = vmatprep.subr.mxu0 0.0
      %1614 = vmatpush2.msra.mxu0 0.0
      %1615 = vmatprep.subr.mxu0 0.0
      %1616 = vmatpush2.msra.mxu0 0.0
      %1617 = vmatprep.subr.mxu0 0.0
      %1618 = vmatpush2.msra.mxu0 0.0
      %1619 = vmatprep.subr.mxu0 0.0
      %1620 = vmatpush2.msra.mxu0 0.0
      %1621 = vmatprep.subr.mxu0 0.0
      %1622 = vmatpush2.msra.mxu0 0.0
      %1623 = vmatprep.subr.mxu0 0.0
      %1624 = vmatpush2.msra.mxu0 0.0
      %1625 = vmatprep.subr.mxu0 0.0
      %1626 = vmatpush2.msra.mxu0 0.0
      %1627 = vmatprep.subr.mxu0 0.0
      %1628 = vmatpush2.msra.mxu0 0.0
      %1629 = vmatprep.subr.mxu0 0.0
      %1630 = vmatpush2.msra.mxu0 0.0
      %1631 = vmatprep.subr.mxu0 0.0
      %1632 = vmatpush2.msra.mxu0 0.0
      %1633 = vmatprep.mubr.f32.mxu0 0.0
      %1634 = vmatmul.mubr.f32.gmra.mxu0 %v1567
      %v1635 = vpop.f32.mrf.mxu0
      %v1636 = vadd.f32 %v1564, %v1635
      %v1637 = vpop.f32.mrf.mxu0
      %v1638 = vadd.f32 %v1564, %v1637
      %1639 = vdwg.mxu0
      %1640 = vmatprep.subr.mxu0 0.0
      %1641 = vmatpush1.msra.mxu0 0.0
      %1642 = vmatprep.subr.mxu0 0.0
      %1643 = vmatpush1.msra.mxu0 0.0
      %1644 = vmatprep.subr.mxu0 0.0
      %1645 = vmatpush1.msra.mxu0 0.0
      %1646 = vmatprep.subr.mxu0 0.0
      %1647 = vmatpush1.msra.mxu0 0.0
      %1648 = vmatprep.subr.mxu0 0.0
      %1649 = vmatpush1.msra.mxu0 0.0
      %1650 = vmatprep.subr.mxu0 0.0
      %1651 = vmatpush1.msra.mxu0 0.0
      %1652 = vmatprep.subr.mxu0 0.0
      %1653 = vmatpush1.msra.mxu0 0.0
      %1654 = vmatprep.subr.mxu0 0.0
      %1655 = vmatpush1.msra.mxu0 0.0
      %1656 = vmatprep.subr.mxu0 0.0
      %1657 = vmatpush1.msra.mxu0 0.0
      %1658 = vmatprep.subr.mxu0 0.0
      %1659 = vmatpush1.msra.mxu0 0.0
      %1660 = vmatprep.subr.mxu0 0.0
      %1661 = vmatpush1.msra.mxu0 0.0
      %1662 = vmatprep.subr.mxu0 0.0
      %1663 = vmatpush1.msra.mxu0 0.0
      %1664 = vmatprep.subr.mxu0 0.0
      %1665 = vmatpush1.msra.mxu0 0.0
      %1666 = vmatprep.subr.mxu0 0.0
      %1667 = vmatpush1.msra.mxu0 0.0
      %1668 = vmatprep.subr.mxu0 0.0
      %1669 = vmatpush1.msra.mxu0 %v1558
      %1670 = vmatprep.subr.mxu0 0.0
      %1671 = vmatpush1.msra.mxu0 %v1555
      %1672 = vmatprep.subr.mxu0 0.0
      %1673 = vmatpush2.msra.mxu0 0.0
      %1674 = vmatprep.subr.mxu0 0.0
      %1675 = vmatpush2.msra.mxu0 0.0
      %1676 = vmatprep.subr.mxu0 0.0
      %1677 = vmatpush2.msra.mxu0 0.0
      %1678 = vmatprep.subr.mxu0 0.0
      %1679 = vmatpush2.msra.mxu0 0.0
      %1680 = vmatprep.subr.mxu0 0.0
      %1681 = vmatpush2.msra.mxu0 0.0
      %1682 = vmatprep.subr.mxu0 0.0
      %1683 = vmatpush2.msra.mxu0 0.0
      %1684 = vmatprep.subr.mxu0 0.0
      %1685 = vmatpush2.msra.mxu0 0.0
      %1686 = vmatprep.subr.mxu0 0.0
      %1687 = vmatpush2.msra.mxu0 0.0
      %1688 = vmatprep.subr.mxu0 0.0
      %1689 = vmatpush2.msra.mxu0 0.0
      %1690 = vmatprep.subr.mxu0 0.0
      %1691 = vmatpush2.msra.mxu0 0.0
      %1692 = vmatprep.subr.mxu0 0.0
      %1693 = vmatpush2.msra.mxu0 0.0
      %1694 = vmatprep.subr.mxu0 0.0
      %1695 = vmatpush2.msra.mxu0 0.0
      %1696 = vmatprep.subr.mxu0 0.0
      %1697 = vmatpush2.msra.mxu0 0.0
      %1698 = vmatprep.subr.mxu0 0.0
      %1699 = vmatpush2.msra.mxu0 0.0
      %1700 = vmatprep.subr.mxu0 0.0
      %1701 = vmatpush2.msra.mxu0 0.0
      %1702 = vmatprep.subr.mxu0 0.0
      %1703 = vmatpush2.msra.mxu0 0.0
      %1704 = vmatprep.mubr.f32.mxu0 0.0
      %1705 = vmatmul.mubr.f32.gmra.mxu0 %v1567
      %v1706 = vpop.f32.mrf.mxu0
      %v1707 = vadd.f32 %v1564, %v1706
      %v1708 = vpop.f32.mrf.mxu0
      %1709 = vdwg.mxu0
      %v1710 = vmax.f32 %v1636, 0.0
      %v1711 = vmax.f32 %v1638, 0.0
      %v1712 = vmax.f32 %v1707, 0.0
      %vm1713 = vcmp.le.s32.totalorder %v550, 14
      %vm1714 = vcmp.le.s32.totalorder %v551, 14
      %vm1715 = vcmp.le.s32.totalorder %v552, 14
      %1716 = vrot.lane.b32.xlu0 %v1710, 127
      %v1717 = vpop.permute.xlu0 %1716
      %1718 = vrot.lane.b32.xlu0 %v1711, 127
      %v1719 = vpop.permute.xlu0 %1718
      %1720 = vrot.lane.b32.xlu0 %v1712, 127
      %v1721 = vpop.permute.xlu0 %1720
      %vm1722 = vcmp.lt.s32.totalorder %v547, 127
      %v1723 = vsel %vm1722, %v1719, %v1721
      %v1724 = vsel %vm1722, %v1717, %v1719
      %v1725 = vsel %vm1722, %v1721, %v1717
      %v1726 = vsel %vm1713, 1, 0
      %v1727 = vsel %vm1714, 1, 0
      %v1728 = vsel %vm1715, 1, 0
      %vm1729 = vcmp.eq.s32.totalorder %v1726, 1
      %vm1730 = vcmp.eq.s32.totalorder %v1727, 1
      %vm1731 = vcmp.eq.s32.totalorder %v1728, 1
      %v1732 = vsel %vm1729, %v1724, 0.0
      %v1733 = vsel %vm1730, %v1723, 0.0
      %v1734 = vsel %vm1731, %v1725, 0.0
      %v1735 = vld [vmem:[%s1 + $0x108] sm:$0x1]
      %v1736 = vld [vmem:[%s1 + $0x158] sm:$0x1]
      %1738 = vset.pattern.permute.xlu0 0
      %1739 = vperm.xlu0 %1738, %v1736
      %v1740 = vpop.permute.xlu0 %1739
      %v1743 = vsel %vm427, %v1735, 0
      %1745 = vmatprep.subr.mxu0 0.0
      %1746 = vmatpush1.msra.mxu0 0.0
      %1747 = vmatprep.subr.mxu0 0.0
      %1748 = vmatpush1.msra.mxu0 0.0
      %1749 = vmatprep.subr.mxu0 0.0
      %1750 = vmatpush1.msra.mxu0 0.0
      %1751 = vmatprep.subr.mxu0 0.0
      %1752 = vmatpush1.msra.mxu0 0.0
      %1753 = vmatprep.subr.mxu0 0.0
      %1754 = vmatpush1.msra.mxu0 0.0
      %1755 = vmatprep.subr.mxu0 0.0
      %1756 = vmatpush1.msra.mxu0 0.0
      %1757 = vmatprep.subr.mxu0 0.0
      %1758 = vmatpush1.msra.mxu0 0.0
      %1759 = vmatprep.subr.mxu0 0.0
      %1760 = vmatpush1.msra.mxu0 0.0
      %1761 = vmatprep.subr.mxu0 0.0
      %1762 = vmatpush1.msra.mxu0 0.0
      %1763 = vmatprep.subr.mxu0 0.0
      %1764 = vmatpush1.msra.mxu0 0.0
      %1765 = vmatprep.subr.mxu0 0.0
      %1766 = vmatpush1.msra.mxu0 0.0
      %1767 = vmatprep.subr.mxu0 0.0
      %1768 = vmatpush1.msra.mxu0 0.0
      %1769 = vmatprep.subr.mxu0 0.0
      %1770 = vmatpush1.msra.mxu0 0.0
      %1771 = vmatprep.subr.mxu0 0.0
      %1772 = vmatpush1.msra.mxu0 0.0
      %1773 = vmatprep.subr.mxu0 %v1733
      %1774 = vmatpush1.msra.mxu0 %v1732
      %1775 = vmatprep.subr.mxu0 %v1711
      %1776 = vmatpush1.msra.mxu0 %v1710
      %1777 = vmatprep.subr.mxu0 0.0
      %1778 = vmatpush2.msra.mxu0 0.0
      %1779 = vmatprep.subr.mxu0 0.0
      %1780 = vmatpush2.msra.mxu0 0.0
      %1781 = vmatprep.subr.mxu0 0.0
      %1782 = vmatpush2.msra.mxu0 0.0
      %1783 = vmatprep.subr.mxu0 0.0
      %1784 = vmatpush2.msra.mxu0 0.0
      %1785 = vmatprep.subr.mxu0 0.0
      %1786 = vmatpush2.msra.mxu0 0.0
      %1787 = vmatprep.subr.mxu0 0.0
      %1788 = vmatpush2.msra.mxu0 0.0
      %1789 = vmatprep.subr.mxu0 0.0
      %1790 = vmatpush2.msra.mxu0 0.0
      %1791 = vmatprep.subr.mxu0 0.0
      %1792 = vmatpush2.msra.mxu0 0.0
      %1793 = vmatprep.subr.mxu0 0.0
      %1794 = vmatpush2.msra.mxu0 0.0
      %1795 = vmatprep.subr.mxu0 0.0
      %1796 = vmatpush2.msra.mxu0 0.0
      %1797 = vmatprep.subr.mxu0 0.0
      %1798 = vmatpush2.msra.mxu0 0.0
      %1799 = vmatprep.subr.mxu0 0.0
      %1800 = vmatpush2.msra.mxu0 0.0
      %1801 = vmatprep.subr.mxu0 0.0
      %1802 = vmatpush2.msra.mxu0 0.0
      %1803 = vmatprep.subr.mxu0 0.0
      %1804 = vmatpush2.msra.mxu0 0.0
      %1805 = vmatprep.subr.mxu0 0.0
      %1806 = vmatpush2.msra.mxu0 0.0
      %1807 = vmatprep.subr.mxu0 0.0
      %1808 = vmatpush2.msra.mxu0 0.0
      %1809 = vmatprep.mubr.f32.mxu0 0.0
      %1810 = vmatmul.mubr.f32.gmra.mxu0 %v1743
      %v1811 = vpop.f32.mrf.mxu0
      %v1812 = vadd.f32 %v1740, %v1811
      %v1813 = vpop.f32.mrf.mxu0
      %v1814 = vadd.f32 %v1740, %v1813
      %1815 = vdwg.mxu0
      %1816 = vmatprep.subr.mxu0 0.0
      %1817 = vmatpush1.msra.mxu0 0.0
      %1818 = vmatprep.subr.mxu0 0.0
      %1819 = vmatpush1.msra.mxu0 0.0
      %1820 = vmatprep.subr.mxu0 0.0
      %1821 = vmatpush1.msra.mxu0 0.0
      %1822 = vmatprep.subr.mxu0 0.0
      %1823 = vmatpush1.msra.mxu0 0.0
      %1824 = vmatprep.subr.mxu0 0.0
      %1825 = vmatpush1.msra.mxu0 0.0
      %1826 = vmatprep.subr.mxu0 0.0
      %1827 = vmatpush1.msra.mxu0 0.0
      %1828 = vmatprep.subr.mxu0 0.0
      %1829 = vmatpush1.msra.mxu0 0.0
      %1830 = vmatprep.subr.mxu0 0.0
      %1831 = vmatpush1.msra.mxu0 0.0
      %1832 = vmatprep.subr.mxu0 0.0
      %1833 = vmatpush1.msra.mxu0 0.0
      %1834 = vmatprep.subr.mxu0 0.0
      %1835 = vmatpush1.msra.mxu0 0.0
      %1836 = vmatprep.subr.mxu0 0.0
      %1837 = vmatpush1.msra.mxu0 0.0
      %1838 = vmatprep.subr.mxu0 0.0
      %1839 = vmatpush1.msra.mxu0 0.0
      %1840 = vmatprep.subr.mxu0 0.0
      %1841 = vmatpush1.msra.mxu0 0.0
      %1842 = vmatprep.subr.mxu0 0.0
      %1843 = vmatpush1.msra.mxu0 0.0
      %1844 = vmatprep.subr.mxu0 0.0
      %1845 = vmatpush1.msra.mxu0 %v1734
      %1846 = vmatprep.subr.mxu0 0.0
      %1847 = vmatpush1.msra.mxu0 %v1712
      %1848 = vmatprep.subr.mxu0 0.0
      %1849 = vmatpush2.msra.mxu0 0.0
      %1850 = vmatprep.subr.mxu0 0.0
      %1851 = vmatpush2.msra.mxu0 0.0
      %1852 = vmatprep.subr.mxu0 0.0
      %1853 = vmatpush2.msra.mxu0 0.0
      %1854 = vmatprep.subr.mxu0 0.0
      %1855 = vmatpush2.msra.mxu0 0.0
      %1856 = vmatprep.subr.mxu0 0.0
      %1857 = vmatpush2.msra.mxu0 0.0
      %1858 = vmatprep.subr.mxu0 0.0
      %1859 = vmatpush2.msra.mxu0 0.0
      %1860 = vmatprep.subr.mxu0 0.0
      %1861 = vmatpush2.msra.mxu0 0.0
      %1862 = vmatprep.subr.mxu0 0.0
      %1863 = vmatpush2.msra.mxu0 0.0
      %1864 = vmatprep.subr.mxu0 0.0
      %1865 = vmatpush2.msra.mxu0 0.0
      %1866 = vmatprep.subr.mxu0 0.0
      %1867 = vmatpush2.msra.mxu0 0.0
      %1868 = vmatprep.subr.mxu0 0.0
      %1869 = vmatpush2.msra.mxu0 0.0
      %1870 = vmatprep.subr.mxu0 0.0
      %1871 = vmatpush2.msra.mxu0 0.0
      %1872 = vmatprep.subr.mxu0 0.0
      %1873 = vmatpush2.msra.mxu0 0.0
      %1874 = vmatprep.subr.mxu0 0.0
      %1875 = vmatpush2.msra.mxu0 0.0
      %1876 = vmatprep.subr.mxu0 0.0
      %1877 = vmatpush2.msra.mxu0 0.0
      %1878 = vmatprep.subr.mxu0 0.0
      %1879 = vmatpush2.msra.mxu0 0.0
      %1880 = vmatprep.mubr.f32.mxu0 0.0
      %1881 = vmatmul.mubr.f32.gmra.mxu0 %v1743
      %v1882 = vpop.f32.mrf.mxu0
      %v1883 = vadd.f32 %v1740, %v1882
      %v1884 = vpop.f32.mrf.mxu0
      %1885 = vdwg.mxu0
      %v1889 = vcombine.low %v1812, %v1814
      %v1891 = vunpack.c.l.s4 1966171168
      %v1892 = vunpack.c.0.s8 %v1891
      %v1893 = vlaneseq
      %v1894 = vshrl.u32 %v1893, 7
      %v1895 = vsub.s32 %v1892, %v1894
      %v1896 = vrot.slane %v1889, %v1895
      %v1898 = vunpack.c.l.s4 1966171168
      %v1899 = vunpack.c.0.s8 %v1898
      %v1900 = vlaneseq
      %v1901 = vshrl.u32 %v1900, 7
      %v1902 = vsub.s32 %v1899, %v1901
      %v1903 = vrot.slane %v1883, %v1902
      %v1904 = vcombine.low %v1896, %v1903
      %v1906 = vunpack.c.l.s4 1966171168
      %v1907 = vunpack.c.0.s8 %v1906
      %v1908 = vlaneseq
      %v1909 = vshrl.u32 %v1908, 7
      %v1910 = vsub.s32 %v1907, %v1909
      %v1911 = vrot.slane %v1904, %v1910
      %v1913 = vlaneseq
      %vm1914 = vcmp.ge.s32.totalorder %v1913, 0
      %vm1915 = vcmp.lt.s32.totalorder %v1913, 384
      %vm1916 = vmand %vm1914, %vm1915
      %1917 = vst.msk [vmem:[%s141] sm:$0x7] %vm1916, %v1911
      %p1918 = scmp.lt.s32.totalorder %s13, 1
      %s1919 = scalar_select %p1918, %s13, 1
      %s1920 = smul.addr %s1919, 3
      %s1921 = scalar_lea.vmem %s2, %s1920
      // Predicated region
      $region29: #{gcn_tcn_forward.1} parent=27 // pred_check
        %p1922 = pneg %p78
      $region30: #{gcn_tcn_forward.1} parent=27 // pred_check_branch
        %1924 = sbr.rel (%p1922) target = $region32
      $region31: #{gcn_tcn_forward.1} parent=27 // pred_region
        _
      $region32: #{gcn_tcn_forward.1} parent=27 // pred_fallthru
        _
    $region28: #{gcn_tcn_forward.1} parent=5 // pred_fallthru
      _
    %p1925 = scmp.le.s32.totalorder 2, %s8
    // Predicated region
    $region33: #{gcn_tcn_forward.1} parent=5 // pred_check
      %p1926 = pneg %p1925
    $region34: #{gcn_tcn_forward.1} parent=5 // pred_check_branch
      %1928 = sbr.rel (%p1926) target = $region36
    $region35: #{gcn_tcn_forward.1} parent=5 // pred_region
      %s1929 = ssub.s32 %s8, 2
      // Predicated region
      $region37: #{gcn_tcn_forward.1} parent=35 // pred_check
        %p1930 = pneg %p84
      $region38: #{gcn_tcn_forward.1} parent=35 // pred_check_branch
        %1932 = sbr.rel (%p1930) target = $region40
      $region39: #{gcn_tcn_forward.1} parent=35 // pred_region
        %p1933 = scmp.lt.s32.totalorder %s14, 1
        %s1934 = scalar_select %p1933, %s14, 1
        %s1935 = smul.addr %s1934, 3
        %s1936 = scalar_lea.vmem %s2, %s1935
      $region40: #{gcn_tcn_forward.1} parent=35 // pred_fallthru
        _
    $region36: #{gcn_tcn_forward.1} parent=5 // pred_fallthru
      _
  $region6: #{gcn_tcn_forward.1} parent=0 // loop_footer
    %s12 = sadd.s32 1, %s8
  $region7: #{gcn_tcn_forward.1} parent=0 // loop_footer_branch
    %7 = sbr.rel target = $region3
  $region8: #{gcn_tcn_forward.1} parent=0 // loop_exit
    _

</llo_original>
